<compile_context>
chip_gen: v5e
topology: v5e:2x2
jax: 0.10.0
libtpu: 0.0.40
codegen_flags: <defaults>
</compile_context>

<pallas_src>
import functools

import jax
import jax.numpy as jnp
from jax import lax
from jax.experimental import pallas as pl
from jax.experimental.pallas import tpu as pltpu


def _round_up(x, m):
    return (x + m - 1) // m * m


def _pick_time_block(T, max_block=32):
    """Timesteps per grid step; minimizes padded tail steps (never Tt=1)."""
    n_blocks = -(-T // max_block)
    return -(-T // n_blocks)


def _pick_row_tile(M, max_tile=512):
    """Divisor of M (multiple of 8) so padding h_flat is a no-op; prefers an
    even number of tiles so the parallel axis shards evenly across 2 TCs."""
    cands = [d for d in range(8, min(M, max_tile) + 1, 8) if M % d == 0]
    if not cands:
        return min(M, max_tile)
    even = [d for d in cands if (M // d) % 2 == 0]
    return max(even) if even else max(cands)


def _pick_vocab_tile(Vp, max_tile=2048):
    for tv in range(min(Vp, max_tile), 127, -128):
        if Vp % tv == 0:
            return tv
    return 128


def _vmem_limit(nbytes):
    return int(min(110 << 20, max(32 << 20, int(nbytes * 1.5) + (2 << 20))))


def _invariant_spec(block_shape, index_map):
    """BlockSpec for a (grid-)invariant input: single pipeline buffer."""
    try:
        return pl.BlockSpec(block_shape, index_map, pipeline_mode=pl.Buffered(1))
    except Exception:                         # older jax without pipeline_mode
        return pl.BlockSpec(block_shape, index_map)


def _gru_recurrent_kernel(gi_ref, h0_ref, w_hh_t_ref, b_hn_ref,
                          h_out_ref, hn_ref, h_scr, *, seq_len):
    """One grid step == Tt timesteps of one batch tile.

    grid      = (batch tiles ["parallel"], time blocks ["arbitrary"])
    gi_ref    : (Tt, Bt, 3*Hp) bf16  precomputed x@W_ih^T + b_ih + b_h{r,z}
    h0_ref    : (Bt, Hp)       f32   initial hidden state
    w_hh_t_ref: (Hp, 3*Hp)     bf16  hidden->hidden weights, pre-transposed
    b_hn_ref  : (1, Hp)        f32   n-gate hidden bias (stays inside r*(...))
    h_out_ref : (Tt, Bt, Hp)   bf16  per-step hidden states (fed to projection)
    hn_ref    : (Bt, Hp)       f32   final hidden state (resident block)
    h_scr     : VMEM (Bt, Hp)  f32   hidden-state carry
    seq_len   : real T, or None if the time axis is not padded (skip the mask)
    """
    s = pl.program_id(1)
    Tt = gi_ref.shape[0]
    Hp = h_scr.shape[1]

    @pl.when(s == 0)
    def _():
        h_scr[...] = h0_ref[...]

    # Hoist the invariant loads out of the unrolled time loop.
    w_hh_t = w_hh_t_ref[...]                          # bf16 (Hp, 3Hp)
    b_hn = b_hn_ref[...]                              # f32  (1, Hp)
    t0 = s * Tt

    def step(i, carry):
        h = h_scr[...]                                # f32 (Bt, Hp)
        gi = gi_ref[i].astype(jnp.float32)            # (Bt, 3*Hp)
        gh = jnp.dot(h.astype(jnp.bfloat16), w_hh_t,
                     preferred_element_type=jnp.float32)
        # PyTorch GRU gate order r|z|n; slices lane-aligned (Hp % 128 == 0).
        r = jax.nn.sigmoid(gi[:, 0:Hp] + gh[:, 0:Hp])
        z = jax.nn.sigmoid(gi[:, Hp:2 * Hp] + gh[:, Hp:2 * Hp])
        n = jnp.tanh(gi[:, 2 * Hp:] + r * (gh[:, 2 * Hp:] + b_hn))
        h_new = (1.0 - z) * n + z * h
        if seq_len is not None:                       # freeze carry on pad tail
            h_new = jnp.where(t0 + i < seq_len, h_new, h)
        h_scr[...] = h_new
        h_out_ref[i] = h_new.astype(h_out_ref.dtype)
        return carry

    # TODO(synk): for Hp >= 1024 split gh into per-gate dots (vreg pressure)
    # and consider pltpu.matmul_push_rhs to keep w_hh resident in the MXU.
    lax.fori_loop(0, Tt, step, 0, unroll=True)

    @pl.when(s == pl.num_programs(1) - 1)
    def _():
        hn_ref[...] = h_scr[...]


def _proj_logits_kernel(h_ref, w_ref, b_ref, logits_ref, lse_ref, m_scr, l_scr):
    """Output projection with an online log-sum-exp over vocab tiles.

    grid = (row tiles ["parallel"], vocab tiles ["arbitrary"]).
    Writes raw logits per (row, vocab) tile and, on the last vocab tile, the
    per-row logsumexp; the final `logits - lse` happens in glue.
    """
    j = pl.program_id(1)

    @pl.when(j == 0)
    def _():
        m_scr[...] = jnp.full_like(m_scr, -jnp.inf)
        l_scr[...] = jnp.zeros_like(l_scr)

    logits = jnp.dot(h_ref[...], w_ref[...],
                     preferred_element_type=jnp.float32) + b_ref[...]
    logits_ref[...] = logits

    m_prev = m_scr[...]
    m_new = jnp.maximum(m_prev, jnp.max(logits, axis=-1, keepdims=True))
    l_scr[...] = (l_scr[...] * jnp.exp(m_prev - m_new)
                  + jnp.sum(jnp.exp(logits - m_new), axis=-1, keepdims=True))
    m_scr[...] = m_new

    @pl.when(j == pl.num_programs(1) - 1)
    def _():
        lse_ref[...] = m_scr[...] + jnp.log(l_scr[...])


@jax.jit
def gru_decoder_forward(oracle, hidden, params):
    """Mirrors SimpleGRUDecoder.forward for num_layers=1 (eval mode).

    oracle : (B, T) int32 token ids
    hidden : (1, B, H) float32 initial hidden state (state['hidden'])
    returns: (log_probs (B, T, V), new_hidden (1, B, H))
    """
    emb_table = params["embedding"]         # (V, E)
    w_ih = params["w_ih"]                   # (3H, E)
    w_hh = params["w_hh"]                   # (3H, H)
    b_ih = params["b_ih"]                   # (3H,)
    b_hh = params["b_hh"]                   # (3H,)
    w_lin = params["w_lin"]                 # (V, H)
    b_lin = params["b_lin"]                 # (V,)

    B, T = oracle.shape
    V, E = emb_table.shape
    H = w_hh.shape[1]
    f32, bf16 = jnp.float32, jnp.bfloat16

    # Padded (vreg-aligned) sizes.
    Bp = _round_up(B, 8)        # sublanes
    Hp = _round_up(H, 128)      # lanes
    Vp = _round_up(V, 128)      # lanes
    Tt = _pick_time_block(T)    # timesteps per grid step
    Tp = _round_up(T, Tt)
    n_tb = Tp // Tt
    # Split the batch across both TensorCores (v7x) when it is big enough.
    n_bt = 2 if Bp % 16 == 0 else 1
    Bt = Bp // n_bt

    # ---- Glue: embedding gather + hoisted input-side matmul (bf16 / f32 acc) -
    x = jnp.take(emb_table, oracle, axis=0)                          # (B, T, E)
    gi = jnp.einsum("bte,ge->btg", x.astype(bf16), w_ih.astype(bf16),
                    preferred_element_type=f32)                      # (B, T, 3H)
    # Fold b_ih fully and the r/z slices of b_hh into gi; the n-gate hidden
    # bias must stay inside r * (W_hn h + b_hn) per PyTorch GRU semantics.
    bias_fold = b_ih.reshape(3, H) + b_hh.reshape(3, H).at[2].set(0.0)
    gi = gi.reshape(B, T, 3, H) + bias_fold
    gi = jnp.pad(gi, ((0, Bp - B), (0, Tp - T), (0, 0), (0, Hp - H)))
    gi = jnp.transpose(gi.reshape(Bp, Tp, 3 * Hp), (1, 0, 2)).astype(bf16)

    # Pre-transposed, per-gate-padded hidden->hidden weights (bf16) & n-bias.
    w_hh_g = jnp.pad(w_hh.reshape(3, H, H),
                     ((0, 0), (0, Hp - H), (0, Hp - H)))             # (3,Hp,Hp)
    w_hh_t = jnp.transpose(w_hh_g, (2, 0, 1)).reshape(Hp, 3 * Hp).astype(bf16)
    b_hn = jnp.pad(b_hh[2 * H:3 * H], (0, Hp - H)).reshape(1, Hp)    # f32

    h0 = jnp.pad(hidden[0].astype(f32), ((0, Bp - B), (0, Hp - H)))  # (Bp, Hp)

    vmem_rec = _vmem_limit(
        2 * Tt * Bt * 3 * Hp * 2      # gi block (bf16, double-buffered)
        + Bt * Hp * 4                 # h0 (single-buffered)
        + Hp * 3 * Hp * 2             # w_hh_t (single-buffered)
        + Hp * 4                      # b_hn
        + 2 * Tt * Bt * Hp * 2        # h_out block
        + 2 * Bt * Hp * 4             # hn block
        + Bt * Hp * 4)                # h_scr

    # ---- Recurrent kernel: parallel batch tiles x serial time blocks --------
    h_all, h_n = pl.pallas_call(
        functools.partial(_gru_recurrent_kernel,
                          seq_len=T if Tp != T else None),
        out_shape=(
            jax.ShapeDtypeStruct((Tp, Bp, Hp), bf16),
            jax.ShapeDtypeStruct((Bp, Hp), f32),
        ),
        grid_spec=pltpu.PrefetchScalarGridSpec(
            num_scalar_prefetch=0,
            grid=(n_bt, n_tb),
            in_specs=[
                pl.BlockSpec((Tt, Bt, 3 * Hp), lambda b, s: (s, b, 0)),  # gi
                _invariant_spec((Bt, Hp), lambda b, s: (b, 0)),          # h0
                _invariant_spec((Hp, 3 * Hp), lambda b, s: (0, 0)),      # w_hh_t
                _invariant_spec((1, Hp), lambda b, s: (0, 0)),           # b_hn
            ],
            out_specs=[
                pl.BlockSpec((Tt, Bt, Hp), lambda b, s: (s, b, 0)),      # h_all
                pl.BlockSpec((Bt, Hp), lambda b, s: (b, 0)),             # final h
            ],
            scratch_shapes=[pltpu.VMEM((Bt, Hp), f32)],
        ),
        compiler_params=pltpu.CompilerParams(
            dimension_semantics=("parallel", "arbitrary"),
            vmem_limit_bytes=vmem_rec,
        ),
    )(gi, h0, w_hh_t, b_hn)

    # ---- Projection + LogSoftmax (parallel rows x arbitrary vocab tiles) ----
    M = T * Bp
    tile_m = _pick_row_tile(M)
    tile_v = _pick_vocab_tile(Vp)
    h_flat = h_all[:T].reshape(M, Hp)                                # bf16

    w_lin_t = jnp.pad(w_lin.T, ((0, Hp - H), (0, Vp - V))).astype(bf16)
    # Padded vocab logits pinned to a huge negative so the softmax ignores them.
    b_lin_p = jnp.full((1, Vp), -1e30, f32).at[0, :V].set(b_lin)

    vmem_proj = _vmem_limit(
        2 * tile_m * Hp * 2           # h rows (bf16)
        + 2 * Hp * tile_v * 2         # weight tile (bf16)
        + 2 * tile_v * 4              # bias tile
        + 2 * tile_m * tile_v * 4     # logits block
        + 2 * tile_m * 4              # lse block
        + 2 * tile_m * 4)             # m/l scratch

    logits_flat, lse_flat = pl.pallas_call(
        _proj_logits_kernel,
        out_shape=(
            jax.ShapeDtypeStruct((M, Vp), f32),
            jax.ShapeDtypeStruct((M, 1), f32),
        ),
        grid_spec=pltpu.PrefetchScalarGridSpec(
            num_scalar_prefetch=0,
            grid=(M // tile_m, Vp // tile_v),
            in_specs=[
                pl.BlockSpec((tile_m, Hp), lambda i, j: (i, 0)),     # h rows
                pl.BlockSpec((Hp, tile_v), lambda i, j: (0, j)),     # w tile
                pl.BlockSpec((1, tile_v), lambda i, j: (0, j)),      # b tile
            ],
            out_specs=[
                pl.BlockSpec((tile_m, tile_v), lambda i, j: (i, j)),  # logits
                pl.BlockSpec((tile_m, 1), lambda i, j: (i, 0)),       # lse
            ],
            scratch_shapes=[pltpu.VMEM((tile_m, 1), f32),
                            pltpu.VMEM((tile_m, 1), f32)],
        ),
        compiler_params=pltpu.CompilerParams(
            dimension_semantics=("parallel", "arbitrary"),
            vmem_limit_bytes=vmem_proj,
        ),
    )(h_flat, w_lin_t, b_lin_p)

    # log_softmax = logits - lse (trivial elementwise; fused by XLA).
    pred = (logits_flat - lse_flat).reshape(T, Bp, Vp)[:, :B, :V]
    pred = jnp.transpose(pred, (1, 0, 2))                 # (B, T, V) batch-first
    new_hidden = h_n[:B, :H][None]                        # (1, B, H)
    return pred, new_hidden


def _reference_forward(oracle, hidden, params):
    """Pure-JAX reference matching PyTorch nn.GRU + Linear + LogSoftmax (f32)."""
    hp = jax.lax.Precision.HIGHEST
    emb = jnp.take(params["embedding"], oracle, axis=0)   # (B, T, E)
    H = params["w_hh"].shape[1]
    w_ih, w_hh = params["w_ih"], params["w_hh"]
    b_ih, b_hh = params["b_ih"], params["b_hh"]

    def cell(h, x_t):
        gi = jnp.dot(x_t, w_ih.T, precision=hp) + b_ih
        gh = jnp.dot(h, w_hh.T, precision=hp) + b_hh
        r = jax.nn.sigmoid(gi[:, :H] + gh[:, :H])
        z = jax.nn.sigmoid(gi[:, H:2 * H] + gh[:, H:2 * H])
        n = jnp.tanh(gi[:, 2 * H:] + r * gh[:, 2 * H:])
        h_new = (1 - z) * n + z * h
        return h_new, h_new

    h_last, outs = jax.lax.scan(cell, hidden[0], jnp.transpose(emb, (1, 0, 2)))
    outs = jnp.transpose(outs, (1, 0, 2))                 # (B, T, H)
    logits = jnp.dot(outs, params["w_lin"].T, precision=hp) + params["b_lin"]
    logp = jax.nn.log_softmax(logits, axis=-1)
    return logp, h_last[None]


def _init_params(key, vocab_size, embedding_size, hidden_size):
    ks = jax.random.split(key, 7)
    s = 0.1
    return {
        "embedding": jax.random.normal(ks[0], (vocab_size, embedding_size), jnp.float32) * s,
        "w_ih": jax.random.normal(ks[1], (3 * hidden_size, embedding_size), jnp.float32) * s,
        "w_hh": jax.random.normal(ks[2], (3 * hidden_size, hidden_size), jnp.float32) * s,
        "b_ih": jax.random.normal(ks[3], (3 * hidden_size,), jnp.float32) * s,
        "b_hh": jax.random.normal(ks[4], (3 * hidden_size,), jnp.float32) * s,
        "w_lin": jax.random.normal(ks[5], (vocab_size, hidden_size), jnp.float32) * s,
        "b_lin": jax.random.normal(ks[6], (vocab_size,), jnp.float32) * s,
    }


if __name__ == "__main__":
    VOCAB, EMB, HID = 64, 16, 32
    B, T = 4, 8

    key = jax.random.PRNGKey(0)
    k_param, k_tok, k_hid = jax.random.split(key, 3)

    params = _init_params(k_param, VOCAB, EMB, HID)
    oracle = jax.random.randint(k_tok, (B, T), 0, VOCAB, dtype=jnp.int32)
    hidden = jax.random.normal(k_hid, (1, B, HID), jnp.float32) * 0.1

    pred, new_hidden = gru_decoder_forward(oracle, hidden, params)
    pred = jax.block_until_ready(pred)
    new_hidden = jax.block_until_ready(new_hidden)

    # Correctness check vs an f32 pure-JAX reference of the PyTorch semantics.
    # Tolerance accounts for the bf16 MXU operands used on the kernel path.
    pred_ref, hid_ref = _reference_forward(oracle, hidden, params)
    assert pred.shape == (B, T, VOCAB) and new_hidden.shape == (1, B, HID)
    assert jnp.allclose(pred, pred_ref, atol=3e-2), "log-softmax mismatch"
    assert jnp.allclose(new_hidden, hid_ref, atol=3e-2), "hidden-state mismatch"

    print("KERNEL_OK")
</pallas_src>

<mosaic_0001>
module attributes {stable_mosaic.version = 11 : i64} {
  func.func @_gru_recurrent_kernel(%arg0: i32, %arg1: i32, %arg2: memref<8x8x384xbf16, #tpu.memory_space<vmem>>, %arg3: memref<8x128xf32, #tpu.memory_space<vmem>>, %arg4: memref<128x384xbf16, #tpu.memory_space<vmem>>, %arg5: memref<1x128xf32, #tpu.memory_space<vmem>>, %arg6: memref<8x8x128xbf16, #tpu.memory_space<vmem>>, %arg7: memref<8x128xf32, #tpu.memory_space<vmem>>, %arg8: memref<8x128xf32, #tpu.memory_space<vmem>>) attributes {dimension_semantics = [#tpu.dimension_semantics<parallel>, #tpu.dimension_semantics<arbitrary>], iteration_bounds = array<i64: 1, 1>, scalar_prefetch = 0 : i64, scratch_operands = 1 : i64, tpu.core_type = #tpu.core_type<tc>, window_params = [{transform_indices = @transform_0, window_bounds = array<i64: 8, 8, 384>}, {pipeline_mode = #tpu.pipeline_mode<synchronous>, transform_indices = @transform_1, window_bounds = array<i64: 8, 128>}, {pipeline_mode = #tpu.pipeline_mode<synchronous>, transform_indices = @transform_2, window_bounds = array<i64: 128, 384>}, {pipeline_mode = #tpu.pipeline_mode<synchronous>, transform_indices = @transform_3, window_bounds = array<i64: 1, 128>}, {transform_indices = @transform_4, window_bounds = array<i64: 8, 8, 128>}, {transform_indices = @transform_5, window_bounds = array<i64: 8, 128>}]} {
    %c0_i32 = arith.constant 0 : i32
    %0 = arith.cmpi eq, %arg1, %c0_i32 : i32
    %1 = arith.extui %0 : i1 to i32
    %c0_i32_0 = arith.constant 0 : i32
    %2 = arith.cmpi ne, %1, %c0_i32_0 : i32
    scf.if %2 {
      %c0_102 = arith.constant 0 : index
      %c0_103 = arith.constant 0 : index
      %336 = vector.load %arg3[%c0_102, %c0_103] : memref<8x128xf32, #tpu.memory_space<vmem>>, vector<8x128xf32>
      %c0_104 = arith.constant 0 : index
      %c0_105 = arith.constant 0 : index
      %337 = vector.load %arg8[%c0_104, %c0_105] : memref<8x128xf32, #tpu.memory_space<vmem>>, vector<8x128xf32>
      tpu.vector_store %arg8[%c0_104, %c0_105], %336 {strides = array<i32>} : memref<8x128xf32, #tpu.memory_space<vmem>>, vector<8x128xf32>,
    } else {
    }
    %c0 = arith.constant 0 : index
    %c0_1 = arith.constant 0 : index
    %3 = vector.load %arg4[%c0, %c0_1] : memref<128x384xbf16, #tpu.memory_space<vmem>>, vector<128x384xbf16>
    %c0_2 = arith.constant 0 : index
    %c0_3 = arith.constant 0 : index
    %4 = vector.load %arg5[%c0_2, %c0_3] : memref<1x128xf32, #tpu.memory_space<vmem>>, vector<1x128xf32>
    %c0_i32_4 = arith.constant 0 : i32
    %c0_5 = arith.constant 0 : index
    %c0_6 = arith.constant 0 : index
    %5 = vector.load %arg8[%c0_5, %c0_6] : memref<8x128xf32, #tpu.memory_space<vmem>>, vector<8x128xf32>
    %6 = arith.index_cast %c0_i32_4 : i32 to index
    %c0_7 = arith.constant 0 : index
    %c0_8 = arith.constant 0 : index
    %7 = vector.load %arg2[%6, %c0_7, %c0_8] : memref<8x8x384xbf16, #tpu.memory_space<vmem>>, vector<1x8x384xbf16>
    %8 = vector.shape_cast %7 : vector<1x8x384xbf16> to vector<8x384xbf16>
    %9 = arith.extf %8 : vector<8x384xbf16> to vector<8x384xf32>
    %10 = arith.truncf %5 : vector<8x128xf32> to vector<8x128xbf16>
    %cst = arith.constant dense<0.000000e+00> : vector<8x384xf32>
    %11 = tpu.matmul %10, %3, %cst {dimension_numbers = #tpu.dot_dimension_numbers<[1], [0], [0], [1], [0, 0, 1, 1], [], []>} : vector<8x128xbf16>, vector<128x384xbf16>, vector<8x384xf32> -> vector<8x384xf32>
    %12 = vector.extract_strided_slice %9 {offsets = [0, 0], sizes = [8, 128], strides = [1, 1]} : vector<8x384xf32> to vector<8x128xf32>
    %13 = vector.extract_strided_slice %11 {offsets = [0, 0], sizes = [8, 128], strides = [1, 1]} : vector<8x384xf32> to vector<8x128xf32>
    %14 = arith.addf %12, %13 : vector<8x128xf32>
    %15 = arith.negf %14 : vector<8x128xf32>
    %16 = math.exp %15 : vector<8x128xf32>
    %cst_9 = arith.constant 1.000000e+00 : f32
    %17 = vector.broadcast %cst_9 : f32 to vector<8x128xf32>
    %18 = arith.addf %17, %16 : vector<8x128xf32>
    %19 = arith.divf %17, %18 : vector<8x128xf32>
    %20 = vector.extract_strided_slice %9 {offsets = [0, 128], sizes = [8, 128], strides = [1, 1]} : vector<8x384xf32> to vector<8x128xf32>
    %21 = vector.extract_strided_slice %11 {offsets = [0, 128], sizes = [8, 128], strides = [1, 1]} : vector<8x384xf32> to vector<8x128xf32>
    %22 = arith.addf %20, %21 : vector<8x128xf32>
    %23 = arith.negf %22 : vector<8x128xf32>
    %24 = math.exp %23 : vector<8x128xf32>
    %cst_10 = arith.constant 1.000000e+00 : f32
    %25 = vector.broadcast %cst_10 : f32 to vector<8x128xf32>
    %26 = arith.addf %25, %24 : vector<8x128xf32>
    %27 = arith.divf %25, %26 : vector<8x128xf32>
    %28 = vector.extract_strided_slice %9 {offsets = [0, 256], sizes = [8, 128], strides = [1, 1]} : vector<8x384xf32> to vector<8x128xf32>
    %29 = vector.extract_strided_slice %11 {offsets = [0, 256], sizes = [8, 128], strides = [1, 1]} : vector<8x384xf32> to vector<8x128xf32>
    %30 = vector.broadcast %4 : vector<1x128xf32> to vector<8x128xf32>
    %31 = arith.addf %29, %30 : vector<8x128xf32>
    %32 = arith.mulf %19, %31 : vector<8x128xf32>
    %33 = arith.addf %28, %32 : vector<8x128xf32>
    %34 = math.tanh %33 : vector<8x128xf32>
    %cst_11 = arith.constant 1.000000e+00 : f32
    %35 = vector.broadcast %cst_11 : f32 to vector<8x128xf32>
    %36 = arith.subf %35, %27 : vector<8x128xf32>
    %37 = arith.mulf %36, %34 : vector<8x128xf32>
    %38 = arith.mulf %27, %5 : vector<8x128xf32>
    %39 = arith.addf %37, %38 : vector<8x128xf32>
    %c0_12 = arith.constant 0 : index
    %c0_13 = arith.constant 0 : index
    %40 = vector.load %arg8[%c0_12, %c0_13] : memref<8x128xf32, #tpu.memory_space<vmem>>, vector<8x128xf32>
    tpu.vector_store %arg8[%c0_12, %c0_13], %39 {strides = array<i32>} : memref<8x128xf32, #tpu.memory_space<vmem>>, vector<8x128xf32>,
    %41 = arith.truncf %39 : vector<8x128xf32> to vector<8x128xbf16>
    %42 = arith.index_cast %c0_i32_4 : i32 to index
    %c0_14 = arith.constant 0 : index
    %c0_15 = arith.constant 0 : index
    %43 = vector.load %arg6[%42, %c0_14, %c0_15] : memref<8x8x128xbf16, #tpu.memory_space<vmem>>, vector<1x8x128xbf16>
    %44 = vector.shape_cast %43 : vector<1x8x128xbf16> to vector<8x128xbf16>
    %45 = vector.shape_cast %41 : vector<8x128xbf16> to vector<1x8x128xbf16>
    tpu.vector_store %arg6[%42, %c0_14, %c0_15], %45 {strides = array<i32>} : memref<8x8x128xbf16, #tpu.memory_space<vmem>>, vector<1x8x128xbf16>,
    %c1_i32 = arith.constant 1 : i32
    %c0_16 = arith.constant 0 : index
    %c0_17 = arith.constant 0 : index
    %46 = vector.load %arg8[%c0_16, %c0_17] : memref<8x128xf32, #tpu.memory_space<vmem>>, vector<8x128xf32>
    %47 = arith.index_cast %c1_i32 : i32 to index
    %c0_18 = arith.constant 0 : index
    %c0_19 = arith.constant 0 : index
    %48 = vector.load %arg2[%47, %c0_18, %c0_19] : memref<8x8x384xbf16, #tpu.memory_space<vmem>>, vector<1x8x384xbf16>
    %49 = vector.shape_cast %48 : vector<1x8x384xbf16> to vector<8x384xbf16>
    %50 = arith.extf %49 : vector<8x384xbf16> to vector<8x384xf32>
    %51 = arith.truncf %46 : vector<8x128xf32> to vector<8x128xbf16>
    %cst_20 = arith.constant dense<0.000000e+00> : vector<8x384xf32>
    %52 = tpu.matmul %51, %3, %cst_20 {dimension_numbers = #tpu.dot_dimension_numbers<[1], [0], [0], [1], [0, 0, 1, 1], [], []>} : vector<8x128xbf16>, vector<128x384xbf16>, vector<8x384xf32> -> vector<8x384xf32>
    %53 = vector.extract_strided_slice %50 {offsets = [0, 0], sizes = [8, 128], strides = [1, 1]} : vector<8x384xf32> to vector<8x128xf32>
    %54 = vector.extract_strided_slice %52 {offsets = [0, 0], sizes = [8, 128], strides = [1, 1]} : vector<8x384xf32> to vector<8x128xf32>
    %55 = arith.addf %53, %54 : vector<8x128xf32>
    %56 = arith.negf %55 : vector<8x128xf32>
    %57 = math.exp %56 : vector<8x128xf32>
    %cst_21 = arith.constant 1.000000e+00 : f32
    %58 = vector.broadcast %cst_21 : f32 to vector<8x128xf32>
    %59 = arith.addf %58, %57 : vector<8x128xf32>
    %60 = arith.divf %58, %59 : vector<8x128xf32>
    %61 = vector.extract_strided_slice %50 {offsets = [0, 128], sizes = [8, 128], strides = [1, 1]} : vector<8x384xf32> to vector<8x128xf32>
    %62 = vector.extract_strided_slice %52 {offsets = [0, 128], sizes = [8, 128], strides = [1, 1]} : vector<8x384xf32> to vector<8x128xf32>
    %63 = arith.addf %61, %62 : vector<8x128xf32>
    %64 = arith.negf %63 : vector<8x128xf32>
    %65 = math.exp %64 : vector<8x128xf32>
    %cst_22 = arith.constant 1.000000e+00 : f32
    %66 = vector.broadcast %cst_22 : f32 to vector<8x128xf32>
    %67 = arith.addf %66, %65 : vector<8x128xf32>
    %68 = arith.divf %66, %67 : vector<8x128xf32>
    %69 = vector.extract_strided_slice %50 {offsets = [0, 256], sizes = [8, 128], strides = [1, 1]} : vector<8x384xf32> to vector<8x128xf32>
    %70 = vector.extract_strided_slice %52 {offsets = [0, 256], sizes = [8, 128], strides = [1, 1]} : vector<8x384xf32> to vector<8x128xf32>
    %71 = vector.broadcast %4 : vector<1x128xf32> to vector<8x128xf32>
    %72 = arith.addf %70, %71 : vector<8x128xf32>
    %73 = arith.mulf %60, %72 : vector<8x128xf32>
    %74 = arith.addf %69, %73 : vector<8x128xf32>
    %75 = math.tanh %74 : vector<8x128xf32>
    %cst_23 = arith.constant 1.000000e+00 : f32
    %76 = vector.broadcast %cst_23 : f32 to vector<8x128xf32>
    %77 = arith.subf %76, %68 : vector<8x128xf32>
    %78 = arith.mulf %77, %75 : vector<8x128xf32>
    %79 = arith.mulf %68, %46 : vector<8x128xf32>
    %80 = arith.addf %78, %79 : vector<8x128xf32>
    %c0_24 = arith.constant 0 : index
    %c0_25 = arith.constant 0 : index
    %81 = vector.load %arg8[%c0_24, %c0_25] : memref<8x128xf32, #tpu.memory_space<vmem>>, vector<8x128xf32>
    tpu.vector_store %arg8[%c0_24, %c0_25], %80 {strides = array<i32>} : memref<8x128xf32, #tpu.memory_space<vmem>>, vector<8x128xf32>,
    %82 = arith.truncf %80 : vector<8x128xf32> to vector<8x128xbf16>
    %83 = arith.index_cast %c1_i32 : i32 to index
    %c0_26 = arith.constant 0 : index
    %c0_27 = arith.constant 0 : index
    %84 = vector.load %arg6[%83, %c0_26, %c0_27] : memref<8x8x128xbf16, #tpu.memory_space<vmem>>, vector<1x8x128xbf16>
    %85 = vector.shape_cast %84 : vector<1x8x128xbf16> to vector<8x128xbf16>
    %86 = vector.shape_cast %82 : vector<8x128xbf16> to vector<1x8x128xbf16>
    tpu.vector_store %arg6[%83, %c0_26, %c0_27], %86 {strides = array<i32>} : memref<8x8x128xbf16, #tpu.memory_space<vmem>>, vector<1x8x128xbf16>,
    %c2_i32 = arith.constant 2 : i32
    %c0_28 = arith.constant 0 : index
    %c0_29 = arith.constant 0 : index
    %87 = vector.load %arg8[%c0_28, %c0_29] : memref<8x128xf32, #tpu.memory_space<vmem>>, vector<8x128xf32>
    %88 = arith.index_cast %c2_i32 : i32 to index
    %c0_30 = arith.constant 0 : index
    %c0_31 = arith.constant 0 : index
    %89 = vector.load %arg2[%88, %c0_30, %c0_31] : memref<8x8x384xbf16, #tpu.memory_space<vmem>>, vector<1x8x384xbf16>
    %90 = vector.shape_cast %89 : vector<1x8x384xbf16> to vector<8x384xbf16>
    %91 = arith.extf %90 : vector<8x384xbf16> to vector<8x384xf32>
    %92 = arith.truncf %87 : vector<8x128xf32> to vector<8x128xbf16>
    %cst_32 = arith.constant dense<0.000000e+00> : vector<8x384xf32>
    %93 = tpu.matmul %92, %3, %cst_32 {dimension_numbers = #tpu.dot_dimension_numbers<[1], [0], [0], [1], [0, 0, 1, 1], [], []>} : vector<8x128xbf16>, vector<128x384xbf16>, vector<8x384xf32> -> vector<8x384xf32>
    %94 = vector.extract_strided_slice %91 {offsets = [0, 0], sizes = [8, 128], strides = [1, 1]} : vector<8x384xf32> to vector<8x128xf32>
    %95 = vector.extract_strided_slice %93 {offsets = [0, 0], sizes = [8, 128], strides = [1, 1]} : vector<8x384xf32> to vector<8x128xf32>
    %96 = arith.addf %94, %95 : vector<8x128xf32>
    %97 = arith.negf %96 : vector<8x128xf32>
    %98 = math.exp %97 : vector<8x128xf32>
    %cst_33 = arith.constant 1.000000e+00 : f32
    %99 = vector.broadcast %cst_33 : f32 to vector<8x128xf32>
    %100 = arith.addf %99, %98 : vector<8x128xf32>
    %101 = arith.divf %99, %100 : vector<8x128xf32>
    %102 = vector.extract_strided_slice %91 {offsets = [0, 128], sizes = [8, 128], strides = [1, 1]} : vector<8x384xf32> to vector<8x128xf32>
    %103 = vector.extract_strided_slice %93 {offsets = [0, 128], sizes = [8, 128], strides = [1, 1]} : vector<8x384xf32> to vector<8x128xf32>
    %104 = arith.addf %102, %103 : vector<8x128xf32>
    %105 = arith.negf %104 : vector<8x128xf32>
    %106 = math.exp %105 : vector<8x128xf32>
    %cst_34 = arith.constant 1.000000e+00 : f32
    %107 = vector.broadcast %cst_34 : f32 to vector<8x128xf32>
    %108 = arith.addf %107, %106 : vector<8x128xf32>
    %109 = arith.divf %107, %108 : vector<8x128xf32>
    %110 = vector.extract_strided_slice %91 {offsets = [0, 256], sizes = [8, 128], strides = [1, 1]} : vector<8x384xf32> to vector<8x128xf32>
    %111 = vector.extract_strided_slice %93 {offsets = [0, 256], sizes = [8, 128], strides = [1, 1]} : vector<8x384xf32> to vector<8x128xf32>
    %112 = vector.broadcast %4 : vector<1x128xf32> to vector<8x128xf32>
    %113 = arith.addf %111, %112 : vector<8x128xf32>
    %114 = arith.mulf %101, %113 : vector<8x128xf32>
    %115 = arith.addf %110, %114 : vector<8x128xf32>
    %116 = math.tanh %115 : vector<8x128xf32>
    %cst_35 = arith.constant 1.000000e+00 : f32
    %117 = vector.broadcast %cst_35 : f32 to vector<8x128xf32>
    %118 = arith.subf %117, %109 : vector<8x128xf32>
    %119 = arith.mulf %118, %116 : vector<8x128xf32>
    %120 = arith.mulf %109, %87 : vector<8x128xf32>
    %121 = arith.addf %119, %120 : vector<8x128xf32>
    %c0_36 = arith.constant 0 : index
    %c0_37 = arith.constant 0 : index
    %122 = vector.load %arg8[%c0_36, %c0_37] : memref<8x128xf32, #tpu.memory_space<vmem>>, vector<8x128xf32>
    tpu.vector_store %arg8[%c0_36, %c0_37], %121 {strides = array<i32>} : memref<8x128xf32, #tpu.memory_space<vmem>>, vector<8x128xf32>,
    %123 = arith.truncf %121 : vector<8x128xf32> to vector<8x128xbf16>
    %124 = arith.index_cast %c2_i32 : i32 to index
    %c0_38 = arith.constant 0 : index
    %c0_39 = arith.constant 0 : index
    %125 = vector.load %arg6[%124, %c0_38, %c0_39] : memref<8x8x128xbf16, #tpu.memory_space<vmem>>, vector<1x8x128xbf16>
    %126 = vector.shape_cast %125 : vector<1x8x128xbf16> to vector<8x128xbf16>
    %127 = vector.shape_cast %123 : vector<8x128xbf16> to vector<1x8x128xbf16>
    tpu.vector_store %arg6[%124, %c0_38, %c0_39], %127 {strides = array<i32>} : memref<8x8x128xbf16, #tpu.memory_space<vmem>>, vector<1x8x128xbf16>,
    %c3_i32 = arith.constant 3 : i32
    %c0_40 = arith.constant 0 : index
    %c0_41 = arith.constant 0 : index
    %128 = vector.load %arg8[%c0_40, %c0_41] : memref<8x128xf32, #tpu.memory_space<vmem>>, vector<8x128xf32>
    %129 = arith.index_cast %c3_i32 : i32 to index
    %c0_42 = arith.constant 0 : index
    %c0_43 = arith.constant 0 : index
    %130 = vector.load %arg2[%129, %c0_42, %c0_43] : memref<8x8x384xbf16, #tpu.memory_space<vmem>>, vector<1x8x384xbf16>
    %131 = vector.shape_cast %130 : vector<1x8x384xbf16> to vector<8x384xbf16>
    %132 = arith.extf %131 : vector<8x384xbf16> to vector<8x384xf32>
    %133 = arith.truncf %128 : vector<8x128xf32> to vector<8x128xbf16>
    %cst_44 = arith.constant dense<0.000000e+00> : vector<8x384xf32>
    %134 = tpu.matmul %133, %3, %cst_44 {dimension_numbers = #tpu.dot_dimension_numbers<[1], [0], [0], [1], [0, 0, 1, 1], [], []>} : vector<8x128xbf16>, vector<128x384xbf16>, vector<8x384xf32> -> vector<8x384xf32>
    %135 = vector.extract_strided_slice %132 {offsets = [0, 0], sizes = [8, 128], strides = [1, 1]} : vector<8x384xf32> to vector<8x128xf32>
    %136 = vector.extract_strided_slice %134 {offsets = [0, 0], sizes = [8, 128], strides = [1, 1]} : vector<8x384xf32> to vector<8x128xf32>
    %137 = arith.addf %135, %136 : vector<8x128xf32>
    %138 = arith.negf %137 : vector<8x128xf32>
    %139 = math.exp %138 : vector<8x128xf32>
    %cst_45 = arith.constant 1.000000e+00 : f32
    %140 = vector.broadcast %cst_45 : f32 to vector<8x128xf32>
    %141 = arith.addf %140, %139 : vector<8x128xf32>
    %142 = arith.divf %140, %141 : vector<8x128xf32>
    %143 = vector.extract_strided_slice %132 {offsets = [0, 128], sizes = [8, 128], strides = [1, 1]} : vector<8x384xf32> to vector<8x128xf32>
    %144 = vector.extract_strided_slice %134 {offsets = [0, 128], sizes = [8, 128], strides = [1, 1]} : vector<8x384xf32> to vector<8x128xf32>
    %145 = arith.addf %143, %144 : vector<8x128xf32>
    %146 = arith.negf %145 : vector<8x128xf32>
    %147 = math.exp %146 : vector<8x128xf32>
    %cst_46 = arith.constant 1.000000e+00 : f32
    %148 = vector.broadcast %cst_46 : f32 to vector<8x128xf32>
    %149 = arith.addf %148, %147 : vector<8x128xf32>
    %150 = arith.divf %148, %149 : vector<8x128xf32>
    %151 = vector.extract_strided_slice %132 {offsets = [0, 256], sizes = [8, 128], strides = [1, 1]} : vector<8x384xf32> to vector<8x128xf32>
    %152 = vector.extract_strided_slice %134 {offsets = [0, 256], sizes = [8, 128], strides = [1, 1]} : vector<8x384xf32> to vector<8x128xf32>
    %153 = vector.broadcast %4 : vector<1x128xf32> to vector<8x128xf32>
    %154 = arith.addf %152, %153 : vector<8x128xf32>
    %155 = arith.mulf %142, %154 : vector<8x128xf32>
    %156 = arith.addf %151, %155 : vector<8x128xf32>
    %157 = math.tanh %156 : vector<8x128xf32>
    %cst_47 = arith.constant 1.000000e+00 : f32
    %158 = vector.broadcast %cst_47 : f32 to vector<8x128xf32>
    %159 = arith.subf %158, %150 : vector<8x128xf32>
    %160 = arith.mulf %159, %157 : vector<8x128xf32>
    %161 = arith.mulf %150, %128 : vector<8x128xf32>
    %162 = arith.addf %160, %161 : vector<8x128xf32>
    %c0_48 = arith.constant 0 : index
    %c0_49 = arith.constant 0 : index
    %163 = vector.load %arg8[%c0_48, %c0_49] : memref<8x128xf32, #tpu.memory_space<vmem>>, vector<8x128xf32>
    tpu.vector_store %arg8[%c0_48, %c0_49], %162 {strides = array<i32>} : memref<8x128xf32, #tpu.memory_space<vmem>>, vector<8x128xf32>,
    %164 = arith.truncf %162 : vector<8x128xf32> to vector<8x128xbf16>
    %165 = arith.index_cast %c3_i32 : i32 to index
    %c0_50 = arith.constant 0 : index
    %c0_51 = arith.constant 0 : index
    %166 = vector.load %arg6[%165, %c0_50, %c0_51] : memref<8x8x128xbf16, #tpu.memory_space<vmem>>, vector<1x8x128xbf16>
    %167 = vector.shape_cast %166 : vector<1x8x128xbf16> to vector<8x128xbf16>
    %168 = vector.shape_cast %164 : vector<8x128xbf16> to vector<1x8x128xbf16>
    tpu.vector_store %arg6[%165, %c0_50, %c0_51], %168 {strides = array<i32>} : memref<8x8x128xbf16, #tpu.memory_space<vmem>>, vector<1x8x128xbf16>,
    %c4_i32 = arith.constant 4 : i32
    %c0_52 = arith.constant 0 : index
    %c0_53 = arith.constant 0 : index
    %169 = vector.load %arg8[%c0_52, %c0_53] : memref<8x128xf32, #tpu.memory_space<vmem>>, vector<8x128xf32>
    %170 = arith.index_cast %c4_i32 : i32 to index
    %c0_54 = arith.constant 0 : index
    %c0_55 = arith.constant 0 : index
    %171 = vector.load %arg2[%170, %c0_54, %c0_55] : memref<8x8x384xbf16, #tpu.memory_space<vmem>>, vector<1x8x384xbf16>
    %172 = vector.shape_cast %171 : vector<1x8x384xbf16> to vector<8x384xbf16>
    %173 = arith.extf %172 : vector<8x384xbf16> to vector<8x384xf32>
    %174 = arith.truncf %169 : vector<8x128xf32> to vector<8x128xbf16>
    %cst_56 = arith.constant dense<0.000000e+00> : vector<8x384xf32>
    %175 = tpu.matmul %174, %3, %cst_56 {dimension_numbers = #tpu.dot_dimension_numbers<[1], [0], [0], [1], [0, 0, 1, 1], [], []>} : vector<8x128xbf16>, vector<128x384xbf16>, vector<8x384xf32> -> vector<8x384xf32>
    %176 = vector.extract_strided_slice %173 {offsets = [0, 0], sizes = [8, 128], strides = [1, 1]} : vector<8x384xf32> to vector<8x128xf32>
    %177 = vector.extract_strided_slice %175 {offsets = [0, 0], sizes = [8, 128], strides = [1, 1]} : vector<8x384xf32> to vector<8x128xf32>
    %178 = arith.addf %176, %177 : vector<8x128xf32>
    %179 = arith.negf %178 : vector<8x128xf32>
    %180 = math.exp %179 : vector<8x128xf32>
    %cst_57 = arith.constant 1.000000e+00 : f32
    %181 = vector.broadcast %cst_57 : f32 to vector<8x128xf32>
    %182 = arith.addf %181, %180 : vector<8x128xf32>
    %183 = arith.divf %181, %182 : vector<8x128xf32>
    %184 = vector.extract_strided_slice %173 {offsets = [0, 128], sizes = [8, 128], strides = [1, 1]} : vector<8x384xf32> to vector<8x128xf32>
    %185 = vector.extract_strided_slice %175 {offsets = [0, 128], sizes = [8, 128], strides = [1, 1]} : vector<8x384xf32> to vector<8x128xf32>
    %186 = arith.addf %184, %185 : vector<8x128xf32>
    %187 = arith.negf %186 : vector<8x128xf32>
    %188 = math.exp %187 : vector<8x128xf32>
    %cst_58 = arith.constant 1.000000e+00 : f32
    %189 = vector.broadcast %cst_58 : f32 to vector<8x128xf32>
    %190 = arith.addf %189, %188 : vector<8x128xf32>
    %191 = arith.divf %189, %190 : vector<8x128xf32>
    %192 = vector.extract_strided_slice %173 {offsets = [0, 256], sizes = [8, 128], strides = [1, 1]} : vector<8x384xf32> to vector<8x128xf32>
    %193 = vector.extract_strided_slice %175 {offsets = [0, 256], sizes = [8, 128], strides = [1, 1]} : vector<8x384xf32> to vector<8x128xf32>
    %194 = vector.broadcast %4 : vector<1x128xf32> to vector<8x128xf32>
    %195 = arith.addf %193, %194 : vector<8x128xf32>
    %196 = arith.mulf %183, %195 : vector<8x128xf32>
    %197 = arith.addf %192, %196 : vector<8x128xf32>
    %198 = math.tanh %197 : vector<8x128xf32>
    %cst_59 = arith.constant 1.000000e+00 : f32
    %199 = vector.broadcast %cst_59 : f32 to vector<8x128xf32>
    %200 = arith.subf %199, %191 : vector<8x128xf32>
    %201 = arith.mulf %200, %198 : vector<8x128xf32>
    %202 = arith.mulf %191, %169 : vector<8x128xf32>
    %203 = arith.addf %201, %202 : vector<8x128xf32>
    %c0_60 = arith.constant 0 : index
    %c0_61 = arith.constant 0 : index
    %204 = vector.load %arg8[%c0_60, %c0_61] : memref<8x128xf32, #tpu.memory_space<vmem>>, vector<8x128xf32>
    tpu.vector_store %arg8[%c0_60, %c0_61], %203 {strides = array<i32>} : memref<8x128xf32, #tpu.memory_space<vmem>>, vector<8x128xf32>,
    %205 = arith.truncf %203 : vector<8x128xf32> to vector<8x128xbf16>
    %206 = arith.index_cast %c4_i32 : i32 to index
    %c0_62 = arith.constant 0 : index
    %c0_63 = arith.constant 0 : index
    %207 = vector.load %arg6[%206, %c0_62, %c0_63] : memref<8x8x128xbf16, #tpu.memory_space<vmem>>, vector<1x8x128xbf16>
    %208 = vector.shape_cast %207 : vector<1x8x128xbf16> to vector<8x128xbf16>
    %209 = vector.shape_cast %205 : vector<8x128xbf16> to vector<1x8x128xbf16>
    tpu.vector_store %arg6[%206, %c0_62, %c0_63], %209 {strides = array<i32>} : memref<8x8x128xbf16, #tpu.memory_space<vmem>>, vector<1x8x128xbf16>,
    %c5_i32 = arith.constant 5 : i32
    %c0_64 = arith.constant 0 : index
    %c0_65 = arith.constant 0 : index
    %210 = vector.load %arg8[%c0_64, %c0_65] : memref<8x128xf32, #tpu.memory_space<vmem>>, vector<8x128xf32>
    %211 = arith.index_cast %c5_i32 : i32 to index
    %c0_66 = arith.constant 0 : index
    %c0_67 = arith.constant 0 : index
    %212 = vector.load %arg2[%211, %c0_66, %c0_67] : memref<8x8x384xbf16, #tpu.memory_space<vmem>>, vector<1x8x384xbf16>
    %213 = vector.shape_cast %212 : vector<1x8x384xbf16> to vector<8x384xbf16>
    %214 = arith.extf %213 : vector<8x384xbf16> to vector<8x384xf32>
    %215 = arith.truncf %210 : vector<8x128xf32> to vector<8x128xbf16>
    %cst_68 = arith.constant dense<0.000000e+00> : vector<8x384xf32>
    %216 = tpu.matmul %215, %3, %cst_68 {dimension_numbers = #tpu.dot_dimension_numbers<[1], [0], [0], [1], [0, 0, 1, 1], [], []>} : vector<8x128xbf16>, vector<128x384xbf16>, vector<8x384xf32> -> vector<8x384xf32>
    %217 = vector.extract_strided_slice %214 {offsets = [0, 0], sizes = [8, 128], strides = [1, 1]} : vector<8x384xf32> to vector<8x128xf32>
    %218 = vector.extract_strided_slice %216 {offsets = [0, 0], sizes = [8, 128], strides = [1, 1]} : vector<8x384xf32> to vector<8x128xf32>
    %219 = arith.addf %217, %218 : vector<8x128xf32>
    %220 = arith.negf %219 : vector<8x128xf32>
    %221 = math.exp %220 : vector<8x128xf32>
    %cst_69 = arith.constant 1.000000e+00 : f32
    %222 = vector.broadcast %cst_69 : f32 to vector<8x128xf32>
    %223 = arith.addf %222, %221 : vector<8x128xf32>
    %224 = arith.divf %222, %223 : vector<8x128xf32>
    %225 = vector.extract_strided_slice %214 {offsets = [0, 128], sizes = [8, 128], strides = [1, 1]} : vector<8x384xf32> to vector<8x128xf32>
    %226 = vector.extract_strided_slice %216 {offsets = [0, 128], sizes = [8, 128], strides = [1, 1]} : vector<8x384xf32> to vector<8x128xf32>
    %227 = arith.addf %225, %226 : vector<8x128xf32>
    %228 = arith.negf %227 : vector<8x128xf32>
    %229 = math.exp %228 : vector<8x128xf32>
    %cst_70 = arith.constant 1.000000e+00 : f32
    %230 = vector.broadcast %cst_70 : f32 to vector<8x128xf32>
    %231 = arith.addf %230, %229 : vector<8x128xf32>
    %232 = arith.divf %230, %231 : vector<8x128xf32>
    %233 = vector.extract_strided_slice %214 {offsets = [0, 256], sizes = [8, 128], strides = [1, 1]} : vector<8x384xf32> to vector<8x128xf32>
    %234 = vector.extract_strided_slice %216 {offsets = [0, 256], sizes = [8, 128], strides = [1, 1]} : vector<8x384xf32> to vector<8x128xf32>
    %235 = vector.broadcast %4 : vector<1x128xf32> to vector<8x128xf32>
    %236 = arith.addf %234, %235 : vector<8x128xf32>
    %237 = arith.mulf %224, %236 : vector<8x128xf32>
    %238 = arith.addf %233, %237 : vector<8x128xf32>
    %239 = math.tanh %238 : vector<8x128xf32>
    %cst_71 = arith.constant 1.000000e+00 : f32
    %240 = vector.broadcast %cst_71 : f32 to vector<8x128xf32>
    %241 = arith.subf %240, %232 : vector<8x128xf32>
    %242 = arith.mulf %241, %239 : vector<8x128xf32>
    %243 = arith.mulf %232, %210 : vector<8x128xf32>
    %244 = arith.addf %242, %243 : vector<8x128xf32>
    %c0_72 = arith.constant 0 : index
    %c0_73 = arith.constant 0 : index
    %245 = vector.load %arg8[%c0_72, %c0_73] : memref<8x128xf32, #tpu.memory_space<vmem>>, vector<8x128xf32>
    tpu.vector_store %arg8[%c0_72, %c0_73], %244 {strides = array<i32>} : memref<8x128xf32, #tpu.memory_space<vmem>>, vector<8x128xf32>,
    %246 = arith.truncf %244 : vector<8x128xf32> to vector<8x128xbf16>
    %247 = arith.index_cast %c5_i32 : i32 to index
    %c0_74 = arith.constant 0 : index
    %c0_75 = arith.constant 0 : index
    %248 = vector.load %arg6[%247, %c0_74, %c0_75] : memref<8x8x128xbf16, #tpu.memory_space<vmem>>, vector<1x8x128xbf16>
    %249 = vector.shape_cast %248 : vector<1x8x128xbf16> to vector<8x128xbf16>
    %250 = vector.shape_cast %246 : vector<8x128xbf16> to vector<1x8x128xbf16>
    tpu.vector_store %arg6[%247, %c0_74, %c0_75], %250 {strides = array<i32>} : memref<8x8x128xbf16, #tpu.memory_space<vmem>>, vector<1x8x128xbf16>,
    %c6_i32 = arith.constant 6 : i32
    %c0_76 = arith.constant 0 : index
    %c0_77 = arith.constant 0 : index
    %251 = vector.load %arg8[%c0_76, %c0_77] : memref<8x128xf32, #tpu.memory_space<vmem>>, vector<8x128xf32>
    %252 = arith.index_cast %c6_i32 : i32 to index
    %c0_78 = arith.constant 0 : index
    %c0_79 = arith.constant 0 : index
    %253 = vector.load %arg2[%252, %c0_78, %c0_79] : memref<8x8x384xbf16, #tpu.memory_space<vmem>>, vector<1x8x384xbf16>
    %254 = vector.shape_cast %253 : vector<1x8x384xbf16> to vector<8x384xbf16>
    %255 = arith.extf %254 : vector<8x384xbf16> to vector<8x384xf32>
    %256 = arith.truncf %251 : vector<8x128xf32> to vector<8x128xbf16>
    %cst_80 = arith.constant dense<0.000000e+00> : vector<8x384xf32>
    %257 = tpu.matmul %256, %3, %cst_80 {dimension_numbers = #tpu.dot_dimension_numbers<[1], [0], [0], [1], [0, 0, 1, 1], [], []>} : vector<8x128xbf16>, vector<128x384xbf16>, vector<8x384xf32> -> vector<8x384xf32>
    %258 = vector.extract_strided_slice %255 {offsets = [0, 0], sizes = [8, 128], strides = [1, 1]} : vector<8x384xf32> to vector<8x128xf32>
    %259 = vector.extract_strided_slice %257 {offsets = [0, 0], sizes = [8, 128], strides = [1, 1]} : vector<8x384xf32> to vector<8x128xf32>
    %260 = arith.addf %258, %259 : vector<8x128xf32>
    %261 = arith.negf %260 : vector<8x128xf32>
    %262 = math.exp %261 : vector<8x128xf32>
    %cst_81 = arith.constant 1.000000e+00 : f32
    %263 = vector.broadcast %cst_81 : f32 to vector<8x128xf32>
    %264 = arith.addf %263, %262 : vector<8x128xf32>
    %265 = arith.divf %263, %264 : vector<8x128xf32>
    %266 = vector.extract_strided_slice %255 {offsets = [0, 128], sizes = [8, 128], strides = [1, 1]} : vector<8x384xf32> to vector<8x128xf32>
    %267 = vector.extract_strided_slice %257 {offsets = [0, 128], sizes = [8, 128], strides = [1, 1]} : vector<8x384xf32> to vector<8x128xf32>
    %268 = arith.addf %266, %267 : vector<8x128xf32>
    %269 = arith.negf %268 : vector<8x128xf32>
    %270 = math.exp %269 : vector<8x128xf32>
    %cst_82 = arith.constant 1.000000e+00 : f32
    %271 = vector.broadcast %cst_82 : f32 to vector<8x128xf32>
    %272 = arith.addf %271, %270 : vector<8x128xf32>
    %273 = arith.divf %271, %272 : vector<8x128xf32>
    %274 = vector.extract_strided_slice %255 {offsets = [0, 256], sizes = [8, 128], strides = [1, 1]} : vector<8x384xf32> to vector<8x128xf32>
    %275 = vector.extract_strided_slice %257 {offsets = [0, 256], sizes = [8, 128], strides = [1, 1]} : vector<8x384xf32> to vector<8x128xf32>
    %276 = vector.broadcast %4 : vector<1x128xf32> to vector<8x128xf32>
    %277 = arith.addf %275, %276 : vector<8x128xf32>
    %278 = arith.mulf %265, %277 : vector<8x128xf32>
    %279 = arith.addf %274, %278 : vector<8x128xf32>
    %280 = math.tanh %279 : vector<8x128xf32>
    %cst_83 = arith.constant 1.000000e+00 : f32
    %281 = vector.broadcast %cst_83 : f32 to vector<8x128xf32>
    %282 = arith.subf %281, %273 : vector<8x128xf32>
    %283 = arith.mulf %282, %280 : vector<8x128xf32>
    %284 = arith.mulf %273, %251 : vector<8x128xf32>
    %285 = arith.addf %283, %284 : vector<8x128xf32>
    %c0_84 = arith.constant 0 : index
    %c0_85 = arith.constant 0 : index
    %286 = vector.load %arg8[%c0_84, %c0_85] : memref<8x128xf32, #tpu.memory_space<vmem>>, vector<8x128xf32>
    tpu.vector_store %arg8[%c0_84, %c0_85], %285 {strides = array<i32>} : memref<8x128xf32, #tpu.memory_space<vmem>>, vector<8x128xf32>,
    %287 = arith.truncf %285 : vector<8x128xf32> to vector<8x128xbf16>
    %288 = arith.index_cast %c6_i32 : i32 to index
    %c0_86 = arith.constant 0 : index
    %c0_87 = arith.constant 0 : index
    %289 = vector.load %arg6[%288, %c0_86, %c0_87] : memref<8x8x128xbf16, #tpu.memory_space<vmem>>, vector<1x8x128xbf16>
    %290 = vector.shape_cast %289 : vector<1x8x128xbf16> to vector<8x128xbf16>
    %291 = vector.shape_cast %287 : vector<8x128xbf16> to vector<1x8x128xbf16>
    tpu.vector_store %arg6[%288, %c0_86, %c0_87], %291 {strides = array<i32>} : memref<8x8x128xbf16, #tpu.memory_space<vmem>>, vector<1x8x128xbf16>,
    %c7_i32 = arith.constant 7 : i32
    %c0_88 = arith.constant 0 : index
    %c0_89 = arith.constant 0 : index
    %292 = vector.load %arg8[%c0_88, %c0_89] : memref<8x128xf32, #tpu.memory_space<vmem>>, vector<8x128xf32>
    %293 = arith.index_cast %c7_i32 : i32 to index
    %c0_90 = arith.constant 0 : index
    %c0_91 = arith.constant 0 : index
    %294 = vector.load %arg2[%293, %c0_90, %c0_91] : memref<8x8x384xbf16, #tpu.memory_space<vmem>>, vector<1x8x384xbf16>
    %295 = vector.shape_cast %294 : vector<1x8x384xbf16> to vector<8x384xbf16>
    %296 = arith.extf %295 : vector<8x384xbf16> to vector<8x384xf32>
    %297 = arith.truncf %292 : vector<8x128xf32> to vector<8x128xbf16>
    %cst_92 = arith.constant dense<0.000000e+00> : vector<8x384xf32>
    %298 = tpu.matmul %297, %3, %cst_92 {dimension_numbers = #tpu.dot_dimension_numbers<[1], [0], [0], [1], [0, 0, 1, 1], [], []>} : vector<8x128xbf16>, vector<128x384xbf16>, vector<8x384xf32> -> vector<8x384xf32>
    %299 = vector.extract_strided_slice %296 {offsets = [0, 0], sizes = [8, 128], strides = [1, 1]} : vector<8x384xf32> to vector<8x128xf32>
    %300 = vector.extract_strided_slice %298 {offsets = [0, 0], sizes = [8, 128], strides = [1, 1]} : vector<8x384xf32> to vector<8x128xf32>
    %301 = arith.addf %299, %300 : vector<8x128xf32>
    %302 = arith.negf %301 : vector<8x128xf32>
    %303 = math.exp %302 : vector<8x128xf32>
    %cst_93 = arith.constant 1.000000e+00 : f32
    %304 = vector.broadcast %cst_93 : f32 to vector<8x128xf32>
    %305 = arith.addf %304, %303 : vector<8x128xf32>
    %306 = arith.divf %304, %305 : vector<8x128xf32>
    %307 = vector.extract_strided_slice %296 {offsets = [0, 128], sizes = [8, 128], strides = [1, 1]} : vector<8x384xf32> to vector<8x128xf32>
    %308 = vector.extract_strided_slice %298 {offsets = [0, 128], sizes = [8, 128], strides = [1, 1]} : vector<8x384xf32> to vector<8x128xf32>
    %309 = arith.addf %307, %308 : vector<8x128xf32>
    %310 = arith.negf %309 : vector<8x128xf32>
    %311 = math.exp %310 : vector<8x128xf32>
    %cst_94 = arith.constant 1.000000e+00 : f32
    %312 = vector.broadcast %cst_94 : f32 to vector<8x128xf32>
    %313 = arith.addf %312, %311 : vector<8x128xf32>
    %314 = arith.divf %312, %313 : vector<8x128xf32>
    %315 = vector.extract_strided_slice %296 {offsets = [0, 256], sizes = [8, 128], strides = [1, 1]} : vector<8x384xf32> to vector<8x128xf32>
    %316 = vector.extract_strided_slice %298 {offsets = [0, 256], sizes = [8, 128], strides = [1, 1]} : vector<8x384xf32> to vector<8x128xf32>
    %317 = vector.broadcast %4 : vector<1x128xf32> to vector<8x128xf32>
    %318 = arith.addf %316, %317 : vector<8x128xf32>
    %319 = arith.mulf %306, %318 : vector<8x128xf32>
    %320 = arith.addf %315, %319 : vector<8x128xf32>
    %321 = math.tanh %320 : vector<8x128xf32>
    %cst_95 = arith.constant 1.000000e+00 : f32
    %322 = vector.broadcast %cst_95 : f32 to vector<8x128xf32>
    %323 = arith.subf %322, %314 : vector<8x128xf32>
    %324 = arith.mulf %323, %321 : vector<8x128xf32>
    %325 = arith.mulf %314, %292 : vector<8x128xf32>
    %326 = arith.addf %324, %325 : vector<8x128xf32>
    %c0_96 = arith.constant 0 : index
    %c0_97 = arith.constant 0 : index
    %327 = vector.load %arg8[%c0_96, %c0_97] : memref<8x128xf32, #tpu.memory_space<vmem>>, vector<8x128xf32>
    tpu.vector_store %arg8[%c0_96, %c0_97], %326 {strides = array<i32>} : memref<8x128xf32, #tpu.memory_space<vmem>>, vector<8x128xf32>,
    %328 = arith.truncf %326 : vector<8x128xf32> to vector<8x128xbf16>
    %329 = arith.index_cast %c7_i32 : i32 to index
    %c0_98 = arith.constant 0 : index
    %c0_99 = arith.constant 0 : index
    %330 = vector.load %arg6[%329, %c0_98, %c0_99] : memref<8x8x128xbf16, #tpu.memory_space<vmem>>, vector<1x8x128xbf16>
    %331 = vector.shape_cast %330 : vector<1x8x128xbf16> to vector<8x128xbf16>
    %332 = vector.shape_cast %328 : vector<8x128xbf16> to vector<1x8x128xbf16>
    tpu.vector_store %arg6[%329, %c0_98, %c0_99], %332 {strides = array<i32>} : memref<8x8x128xbf16, #tpu.memory_space<vmem>>, vector<1x8x128xbf16>,
    %c8_i32 = arith.constant 8 : i32
    %c0_i32_100 = arith.constant 0 : i32
    %333 = arith.cmpi eq, %arg1, %c0_i32_100 : i32
    %334 = arith.extui %333 : i1 to i32
    %c0_i32_101 = arith.constant 0 : i32
    %335 = arith.cmpi ne, %334, %c0_i32_101 : i32
    scf.if %335 {
      %c0_102 = arith.constant 0 : index
      %c0_103 = arith.constant 0 : index
      %336 = vector.load %arg8[%c0_102, %c0_103] : memref<8x128xf32, #tpu.memory_space<vmem>>, vector<8x128xf32>
      %c0_104 = arith.constant 0 : index
      %c0_105 = arith.constant 0 : index
      %337 = vector.load %arg7[%c0_104, %c0_105] : memref<8x128xf32, #tpu.memory_space<vmem>>, vector<8x128xf32>
      tpu.vector_store %arg7[%c0_104, %c0_105], %336 {strides = array<i32>} : memref<8x128xf32, #tpu.memory_space<vmem>>, vector<8x128xf32>,
    } else {
    }
    return
  }
  func.func @transform_0(%arg0: i32, %arg1: i32) -> (i32, i32, i32) {
    %c0_i32 = arith.constant 0 : i32
    %c0_i32_0 = arith.constant 0 : i32
    return %arg1, %arg0, %c0_i32 : i32, i32, i32
  }
  func.func @transform_1(%arg0: i32, %arg1: i32) -> (i32, i32) {
    %c0_i32 = arith.constant 0 : i32
    %c0_i32_0 = arith.constant 0 : i32
    return %arg0, %c0_i32 : i32, i32
  }
  func.func @transform_2(%arg0: i32, %arg1: i32) -> (i32, i32) {
    %c0_i32 = arith.constant 0 : i32
    %c0_i32_0 = arith.constant 0 : i32
    %c0_i32_1 = arith.constant 0 : i32
    return %c0_i32, %c0_i32_0 : i32, i32
  }
  func.func @transform_3(%arg0: i32, %arg1: i32) -> (i32, i32) {
    %c0_i32 = arith.constant 0 : i32
    %c0_i32_0 = arith.constant 0 : i32
    %c0_i32_1 = arith.constant 0 : i32
    return %c0_i32, %c0_i32_0 : i32, i32
  }
  func.func @transform_4(%arg0: i32, %arg1: i32) -> (i32, i32, i32) {
    %c0_i32 = arith.constant 0 : i32
    %c0_i32_0 = arith.constant 0 : i32
    return %arg1, %arg0, %c0_i32 : i32, i32, i32
  }
  func.func @transform_5(%arg0: i32, %arg1: i32) -> (i32, i32) {
    %c0_i32 = arith.constant 0 : i32
    %c0_i32_0 = arith.constant 0 : i32
    return %arg0, %c0_i32 : i32, i32
  }
}

module attributes {stable_mosaic.version = 11 : i64} {
  func.func @_proj_logits_kernel(%arg0: i32, %arg1: i32, %arg2: memref<32x128xbf16, #tpu.memory_space<vmem>>, %arg3: memref<128x128xbf16, #tpu.memory_space<vmem>>, %arg4: memref<1x128xf32, #tpu.memory_space<vmem>>, %arg5: memref<32x128xf32, #tpu.memory_space<vmem>>, %arg6: memref<32x1xf32, #tpu.memory_space<vmem>>, %arg7: memref<32x1xf32, #tpu.memory_space<vmem>>, %arg8: memref<32x1xf32, #tpu.memory_space<vmem>>) attributes {dimension_semantics = [#tpu.dimension_semantics<parallel>, #tpu.dimension_semantics<arbitrary>], iteration_bounds = array<i64: 2, 1>, scalar_prefetch = 0 : i64, scratch_operands = 2 : i64, tpu.core_type = #tpu.core_type<tc>, window_params = [{transform_indices = @transform_0, window_bounds = array<i64: 32, 128>}, {transform_indices = @transform_1, window_bounds = array<i64: 128, 128>}, {transform_indices = @transform_2, window_bounds = array<i64: 1, 128>}, {transform_indices = @transform_3, window_bounds = array<i64: 32, 128>}, {transform_indices = @transform_4, window_bounds = array<i64: 32, 1>}]} {
    %c0_i32 = arith.constant 0 : i32
    %0 = arith.cmpi eq, %arg1, %c0_i32 : i32
    %1 = arith.extui %0 : i1 to i32
    %c0_i32_0 = arith.constant 0 : i32
    %2 = arith.cmpi ne, %1, %c0_i32_0 : i32
    scf.if %2 {
      %cst_20 = arith.constant 0xFF800000 : f32
      %29 = vector.broadcast %cst_20 : f32 to vector<32x1xf32>
      %c0_21 = arith.constant 0 : index
      %c0_22 = arith.constant 0 : index
      %30 = vector.load %arg7[%c0_21, %c0_22] : memref<32x1xf32, #tpu.memory_space<vmem>>, vector<32x1xf32>
      tpu.vector_store %arg7[%c0_21, %c0_22], %29 {strides = array<i32>} : memref<32x1xf32, #tpu.memory_space<vmem>>, vector<32x1xf32>,
      %cst_23 = arith.constant 0.000000e+00 : f32
      %31 = vector.broadcast %cst_23 : f32 to vector<32x1xf32>
      %c0_24 = arith.constant 0 : index
      %c0_25 = arith.constant 0 : index
      %32 = vector.load %arg8[%c0_24, %c0_25] : memref<32x1xf32, #tpu.memory_space<vmem>>, vector<32x1xf32>
      tpu.vector_store %arg8[%c0_24, %c0_25], %31 {strides = array<i32>} : memref<32x1xf32, #tpu.memory_space<vmem>>, vector<32x1xf32>,
    } else {
    }
    %c0 = arith.constant 0 : index
    %c0_1 = arith.constant 0 : index
    %3 = vector.load %arg2[%c0, %c0_1] : memref<32x128xbf16, #tpu.memory_space<vmem>>, vector<32x128xbf16>
    %c0_2 = arith.constant 0 : index
    %c0_3 = arith.constant 0 : index
    %4 = vector.load %arg3[%c0_2, %c0_3] : memref<128x128xbf16, #tpu.memory_space<vmem>>, vector<128x128xbf16>
    %cst = arith.constant dense<0.000000e+00> : vector<32x128xf32>
    %5 = tpu.matmul %3, %4, %cst {dimension_numbers = #tpu.dot_dimension_numbers<[1], [0], [0], [1], [0, 0, 1, 1], [], []>} : vector<32x128xbf16>, vector<128x128xbf16>, vector<32x128xf32> -> vector<32x128xf32>
    %c0_4 = arith.constant 0 : index
    %c0_5 = arith.constant 0 : index
    %6 = vector.load %arg4[%c0_4, %c0_5] : memref<1x128xf32, #tpu.memory_space<vmem>>, vector<1x128xf32>
    %7 = vector.broadcast %6 : vector<1x128xf32> to vector<32x128xf32>
    %8 = arith.addf %5, %7 : vector<32x128xf32>
    %c0_6 = arith.constant 0 : index
    %c0_7 = arith.constant 0 : index
    %9 = vector.load %arg5[%c0_6, %c0_7] : memref<32x128xf32, #tpu.memory_space<vmem>>, vector<32x128xf32>
    tpu.vector_store %arg5[%c0_6, %c0_7], %8 {strides = array<i32>} : memref<32x128xf32, #tpu.memory_space<vmem>>, vector<32x128xf32>,
    %c0_8 = arith.constant 0 : index
    %c0_9 = arith.constant 0 : index
    %10 = vector.load %arg7[%c0_8, %c0_9] : memref<32x1xf32, #tpu.memory_space<vmem>>, vector<32x1xf32>
    %cst_10 = arith.constant dense<0xFF800000> : vector<32xf32>
    %11 = vector.multi_reduction <maximumf>, %8, %cst_10 [1] : vector<32x128xf32> to vector<32xf32>
    %12 = vector.shape_cast %11 : vector<32xf32> to vector<32x1xf32>
    %13 = arith.maximumf %10, %12 : vector<32x1xf32>
    %c0_11 = arith.constant 0 : index
    %c0_12 = arith.constant 0 : index
    %14 = vector.load %arg8[%c0_11, %c0_12] : memref<32x1xf32, #tpu.memory_space<vmem>>, vector<32x1xf32>
    %15 = arith.subf %10, %13 : vector<32x1xf32>
    %16 = math.exp %15 : vector<32x1xf32>
    %17 = arith.mulf %14, %16 : vector<32x1xf32>
    %18 = vector.broadcast %13 : vector<32x1xf32> to vector<32x128xf32>
    %19 = arith.subf %8, %18 : vector<32x128xf32>
    %20 = math.exp %19 : vector<32x128xf32>
    %cst_13 = arith.constant dense<0.000000e+00> : vector<32xf32>
    %21 = vector.multi_reduction <add>, %20, %cst_13 [1] : vector<32x128xf32> to vector<32xf32>
    %22 = vector.shape_cast %21 : vector<32xf32> to vector<32x1xf32>
    %23 = arith.addf %17, %22 : vector<32x1xf32>
    %c0_14 = arith.constant 0 : index
    %c0_15 = arith.constant 0 : index
    %24 = vector.load %arg8[%c0_14, %c0_15] : memref<32x1xf32, #tpu.memory_space<vmem>>, vector<32x1xf32>
    tpu.vector_store %arg8[%c0_14, %c0_15], %23 {strides = array<i32>} : memref<32x1xf32, #tpu.memory_space<vmem>>, vector<32x1xf32>,
    %c0_16 = arith.constant 0 : index
    %c0_17 = arith.constant 0 : index
    %25 = vector.load %arg7[%c0_16, %c0_17] : memref<32x1xf32, #tpu.memory_space<vmem>>, vector<32x1xf32>
    tpu.vector_store %arg7[%c0_16, %c0_17], %13 {strides = array<i32>} : memref<32x1xf32, #tpu.memory_space<vmem>>, vector<32x1xf32>,
    %c0_i32_18 = arith.constant 0 : i32
    %26 = arith.cmpi eq, %arg1, %c0_i32_18 : i32
    %27 = arith.extui %26 : i1 to i32
    %c0_i32_19 = arith.constant 0 : i32
    %28 = arith.cmpi ne, %27, %c0_i32_19 : i32
    scf.if %28 {
      %c0_20 = arith.constant 0 : index
      %c0_21 = arith.constant 0 : index
      %29 = vector.load %arg7[%c0_20, %c0_21] : memref<32x1xf32, #tpu.memory_space<vmem>>, vector<32x1xf32>
      %c0_22 = arith.constant 0 : index
      %c0_23 = arith.constant 0 : index
      %30 = vector.load %arg8[%c0_22, %c0_23] : memref<32x1xf32, #tpu.memory_space<vmem>>, vector<32x1xf32>
      %31 = math.log %30 : vector<32x1xf32>
      %32 = arith.addf %29, %31 : vector<32x1xf32>
      %c0_24 = arith.constant 0 : index
      %c0_25 = arith.constant 0 : index
      %33 = vector.load %arg6[%c0_24, %c0_25] : memref<32x1xf32, #tpu.memory_space<vmem>>, vector<32x1xf32>
      tpu.vector_store %arg6[%c0_24, %c0_25], %32 {strides = array<i32>} : memref<32x1xf32, #tpu.memory_space<vmem>>, vector<32x1xf32>,
    } else {
    }
    return
  }
  func.func @transform_0(%arg0: i32, %arg1: i32) -> (i32, i32) {
    %c0_i32 = arith.constant 0 : i32
    %c0_i32_0 = arith.constant 0 : i32
    return %arg0, %c0_i32 : i32, i32
  }
  func.func @transform_1(%arg0: i32, %arg1: i32) -> (i32, i32) {
    %c0_i32 = arith.constant 0 : i32
    %c0_i32_0 = arith.constant 0 : i32
    return %c0_i32, %arg1 : i32, i32
  }
  func.func @transform_2(%arg0: i32, %arg1: i32) -> (i32, i32) {
    %c0_i32 = arith.constant 0 : i32
    %c0_i32_0 = arith.constant 0 : i32
    return %c0_i32, %arg1 : i32, i32
  }
  func.func @transform_3(%arg0: i32, %arg1: i32) -> (i32, i32) {
    %c0_i32 = arith.constant 0 : i32
    return %arg0, %arg1 : i32, i32
  }
  func.func @transform_4(%arg0: i32, %arg1: i32) -> (i32, i32) {
    %c0_i32 = arith.constant 0 : i32
    %c0_i32_0 = arith.constant 0 : i32
    return %arg0, %c0_i32 : i32, i32
  }
}

</mosaic_0001>

<llo_original>
// kernel: gru_decoder_forward.3
$region0: #{gru_decoder_forward.3}
  #allocation0 [shape = 'u32[]', space=smem, size = 0x4, offset = 0x4, fixed_abs, tag = 'smem constant byte address 0x4 - core index']
  #allocation1 [shape = 'u32[72,128]{1,0:T(1,128)}', space=vmem, size = 0x9000, scoped, tag = 'internal scratch']
  #allocation2 [shape = 'f32[32,1]{1,0:T(8,128)}', space=vmem, size = 0x4000, scoped, tag = 'scratch operand']
  #allocation3 [shape = 'f32[32,1]{1,0:T(8,128)}', space=vmem, size = 0x4000, scoped, tag = 'scratch operand']
  %s0 = inlined_call_operand.vmem [shape: bf16[64,128], index: 0, kind: input, shape index: {}]
  %s1 = inlined_call_operand.vmem [shape: bf16[128,128], index: 1, kind: input, shape index: {}]
  %s2 = inlined_call_operand.vmem [shape: f32[1,128], index: 2, kind: input, shape index: {}]
  %s3 = inlined_call_operand.vmem [shape: f32[64,128], index: 3, kind: output, shape index: {0}]
  %s4 = inlined_call_operand.vmem [shape: f32[64,1], index: 4, kind: output, shape index: {1}]
  %5 = xla_tuple %s3, %s4
  %s6 = sld [smem:[#allocation0]]
  $region61: #{gru_decoder_forward.3} parent=0
    _
  %s8 = ssub.s32 1, %s6
  %s9 = scalar_select 0, %s8, %s6
  loop: start=0, step=1, limit=4
  $region2: #{gru_decoder_forward.3} parent=0 // loop_pre_header
    _
  $region3: #{gru_decoder_forward.3} parent=0 // loop_header
    %s11 = sphi 0, %s15
    %p12 = scmp.ge.s32.totalorder %s11, 4
    %s18 = sphi 0, %s30
    %s19 = sphi 0, %s26
    %s20 = sphi 0, %s18
    %s21 = sphi 0, %s19
    %s22 = sphi 0, %s20
    %s23 = sphi 0, %s21
    %s33 = sphi 0, %s35
    %s36 = sphi 0, %s33
    %s37 = sphi 0, %s36
    %s53 = sphi 0, %s37
    %s59 = sphi 0, %s61
    %s62 = sphi 0, %s59
    %s63 = sphi 0, %s62
    %s79 = sphi 0, %s63
    %s85 = sphi 0, %s87
    %s88 = sphi 0, %s85
    %s89 = sphi 0, %s88
    %s105 = sphi 0, %s89
    %s113 = sphi 0, %s115
    %s116 = sphi 0, %s113
    %s117 = sphi 0, %s116
    %s133 = sphi 0, %s117
    %s139 = sphi 0, %s141
    %s142 = sphi 0, %s139
    %s143 = sphi 0, %s142
    %s159 = sphi 0, %s143
  $region4: #{gru_decoder_forward.3} parent=0 // loop_header_branch
    %14 = sbr.rel (%p12) target = $region8
  $region5: #{gru_decoder_forward.3} parent=0 // loop_body
    %s16 = ssub.s32 %s11, 1
    %s17 = ssub.s32 %s11, 2
    %s24 = sadd.s32 1, %s19
    %p25 = scmp.ge.s32.totalorder %s24, 1
    %s26 = scalar_select %p25, 0, %s24
    %s27 = sadd.s32 1, %s18
    %s28 = scalar_select %p25, %s27, %s18
    %p29 = scmp.ge.s32.totalorder %s28, 2
    %s30 = scalar_select %p29, 0, %s28
    %s31 = ssub.s32 %s18, %s30
    %p32 = scmp.eq.s32.totalorder %s31, 0
    %s34 = sadd.s32 %s33, 1
    %s35 = scalar_select %p32, %s33, %s34
    %p38 = pneg %p32
    %p39 = scmp.eq.s32.totalorder %s11, 1
    %p40 = por %p38, %p39
    %p41 = scmp.ne.s32.totalorder %s33, %s36
    %p42 = scmp.eq.s32.totalorder %s11, 0
    %p43 = por %p41, %p42
    %p44 = scmp.ne.s32.totalorder %s33, %s36
    %p45 = scmp.eq.s32.totalorder %s16, 1
    %p46 = por %p44, %p45
    %p47 = scmp.ne.s32.totalorder %s36, %s37
    %p48 = scmp.eq.s32.totalorder %s16, 0
    %p49 = por %p47, %p48
    %p50 = scmp.ne.s32.totalorder %s36, %s37
    %p51 = scmp.eq.s32.totalorder %s17, 1
    %p52 = por %p50, %p51
    %p54 = scmp.ne.s32.totalorder %s37, %s53
    %p55 = scmp.eq.s32.totalorder %s17, 0
    %p56 = por %p54, %p55
    %s57 = ssub.s32 %s19, %s26
    %p58 = scmp.eq.s32.totalorder %s57, 0
    %s60 = sadd.s32 %s59, 1
    %s61 = scalar_select %p58, %s59, %s60
    %p64 = pneg %p58
    %p65 = scmp.eq.s32.totalorder %s11, 1
    %p66 = por %p64, %p65
    %p67 = scmp.ne.s32.totalorder %s59, %s62
    %p68 = scmp.eq.s32.totalorder %s11, 0
    %p69 = por %p67, %p68
    %p70 = scmp.ne.s32.totalorder %s59, %s62
    %p71 = scmp.eq.s32.totalorder %s16, 1
    %p72 = por %p70, %p71
    %p73 = scmp.ne.s32.totalorder %s62, %s63
    %p74 = scmp.eq.s32.totalorder %s16, 0
    %p75 = por %p73, %p74
    %p76 = scmp.ne.s32.totalorder %s62, %s63
    %p77 = scmp.eq.s32.totalorder %s17, 1
    %p78 = por %p76, %p77
    %p80 = scmp.ne.s32.totalorder %s63, %s79
    %p81 = scmp.eq.s32.totalorder %s17, 0
    %p82 = por %p80, %p81
    %s83 = ssub.s32 %s19, %s26
    %p84 = scmp.eq.s32.totalorder %s83, 0
    %s86 = sadd.s32 %s85, 1
    %s87 = scalar_select %p84, %s85, %s86
    %p90 = pneg %p84
    %p91 = scmp.eq.s32.totalorder %s11, 1
    %p92 = por %p90, %p91
    %p93 = scmp.ne.s32.totalorder %s85, %s88
    %p94 = scmp.eq.s32.totalorder %s11, 0
    %p95 = por %p93, %p94
    %p96 = scmp.ne.s32.totalorder %s85, %s88
    %p97 = scmp.eq.s32.totalorder %s16, 1
    %p98 = por %p96, %p97
    %p99 = scmp.ne.s32.totalorder %s88, %s89
    %p100 = scmp.eq.s32.totalorder %s16, 0
    %p101 = por %p99, %p100
    %p102 = scmp.ne.s32.totalorder %s88, %s89
    %p103 = scmp.eq.s32.totalorder %s17, 1
    %p104 = por %p102, %p103
    %p106 = scmp.ne.s32.totalorder %s89, %s105
    %p107 = scmp.eq.s32.totalorder %s17, 0
    %p108 = por %p106, %p107
    %s109 = ssub.s32 %s18, %s30
    %s110 = ssub.s32 %s19, %s26
    %s111 = sor.u32 %s109, %s110
    %p112 = scmp.eq.s32.totalorder %s111, 0
    %s114 = sadd.s32 %s113, 1
    %s115 = scalar_select %p112, %s113, %s114
    %p118 = pneg %p112
    %p119 = scmp.eq.s32.totalorder %s11, 1
    %p120 = por %p118, %p119
    %p121 = scmp.ne.s32.totalorder %s113, %s116
    %p122 = scmp.eq.s32.totalorder %s11, 0
    %p123 = por %p121, %p122
    %p124 = scmp.ne.s32.totalorder %s113, %s116
    %p125 = scmp.eq.s32.totalorder %s16, 1
    %p126 = por %p124, %p125
    %p127 = scmp.ne.s32.totalorder %s116, %s117
    %p128 = scmp.eq.s32.totalorder %s16, 0
    %p129 = por %p127, %p128
    %p130 = scmp.ne.s32.totalorder %s116, %s117
    %p131 = scmp.eq.s32.totalorder %s17, 1
    %p132 = por %p130, %p131
    %p134 = scmp.ne.s32.totalorder %s117, %s133
    %p135 = scmp.eq.s32.totalorder %s17, 0
    %p136 = por %p134, %p135
    %s137 = ssub.s32 %s18, %s30
    %p138 = scmp.eq.s32.totalorder %s137, 0
    %s140 = sadd.s32 %s139, 1
    %s141 = scalar_select %p138, %s139, %s140
    %p144 = pneg %p138
    %p145 = scmp.eq.s32.totalorder %s11, 1
    %p146 = por %p144, %p145
    %p147 = scmp.ne.s32.totalorder %s139, %s142
    %p148 = scmp.eq.s32.totalorder %s11, 0
    %p149 = por %p147, %p148
    %p150 = scmp.ne.s32.totalorder %s139, %s142
    %p151 = scmp.eq.s32.totalorder %s16, 1
    %p152 = por %p150, %p151
    %p153 = scmp.ne.s32.totalorder %s142, %s143
    %p154 = scmp.eq.s32.totalorder %s16, 0
    %p155 = por %p153, %p154
    %p156 = scmp.ne.s32.totalorder %s142, %s143
    %p157 = scmp.eq.s32.totalorder %s17, 1
    %p158 = por %p156, %p157
    %p160 = scmp.ne.s32.totalorder %s143, %s159
    %p161 = scmp.eq.s32.totalorder %s17, 0
    %p162 = por %p160, %p161
    %p163 = scmp.le.s32.totalorder 1, %s11
    %p164 = scmp.lt.s32.totalorder %s11, 3
    %p165 = pnand %p163, %p164
    %p166 = pneg %p165
    // Predicated region
    $region9: #{gru_decoder_forward.3} parent=5 // pred_check
      _
    $region10: #{gru_decoder_forward.3} parent=5 // pred_check_branch
      %168 = sbr.rel (%p165) target = $region12
    $region11: #{gru_decoder_forward.3} parent=5 // pred_region
      %s169 = ssub.s32 %s11, 1
      // Predicated region
      $region13: #{gru_decoder_forward.3} parent=11 // pred_check
        %p170 = pneg %p75
      $region14: #{gru_decoder_forward.3} parent=11 // pred_check_branch
        %172 = sbr.rel (%p170) target = $region16
      $region15: #{gru_decoder_forward.3} parent=11 // pred_region
        %p173 = scmp.lt.s32.totalorder %s21, 0
        %s174 = scalar_select %p173, %s21, 0
        %s175 = smul.addr %s174, 4
        %s176 = scalar_lea.vmem %s1, %s175
      $region16: #{gru_decoder_forward.3} parent=11 // pred_fallthru
        _
      // Predicated region
      $region17: #{gru_decoder_forward.3} parent=11 // pred_check
        %p177 = pneg %p101
      $region18: #{gru_decoder_forward.3} parent=11 // pred_check_branch
        %179 = sbr.rel (%p177) target = $region20
      $region19: #{gru_decoder_forward.3} parent=11 // pred_region
        %p180 = scmp.lt.s32.totalorder %s21, 0
        %s181 = scalar_select %p180, %s21, 0
        %s182 = scalar_lea.vmem %s2, %s181
      $region20: #{gru_decoder_forward.3} parent=11 // pred_fallthru
        _
    $region12: #{gru_decoder_forward.3} parent=5 // pred_fallthru
      _
    %p183 = scmp.lt.s32.totalorder %s11, 2
    // Predicated region
    $region21: #{gru_decoder_forward.3} parent=5 // pred_check
      %p184 = pneg %p183
    $region22: #{gru_decoder_forward.3} parent=5 // pred_check_branch
      %186 = sbr.rel (%p184) target = $region24
    $region23: #{gru_decoder_forward.3} parent=5 // pred_region
      // Predicated region
      $region25: #{gru_decoder_forward.3} parent=23 // pred_check
        %p187 = pneg %p43
      $region26: #{gru_decoder_forward.3} parent=23 // pred_check_branch
        %189 = sbr.rel (%p187) target = $region28
      $region27: #{gru_decoder_forward.3} parent=23 // pred_region
        %s190 = smul.u32 4, %s18
        %p191 = scmp.lt.s32.totalorder %s190, 7
        %s192 = scalar_select %p191, %s190, 7
        %s193 = smul.addr %s192, 4
        %s194 = scalar_lea.vmem %s0, %s193
        %s195 = smul.u32 4, %s18
      $region28: #{gru_decoder_forward.3} parent=23 // pred_fallthru
        _
    $region24: #{gru_decoder_forward.3} parent=5 // pred_fallthru
      _
    %p196 = scmp.le.s32.totalorder 1, %s11
    %p197 = scmp.lt.s32.totalorder %s11, 3
    %p198 = pnand %p196, %p197
    %p199 = pneg %p198
    // Predicated region
    $region29: #{gru_decoder_forward.3} parent=5 // pred_check
      _
    $region30: #{gru_decoder_forward.3} parent=5 // pred_check_branch
      %201 = sbr.rel (%p198) target = $region32
    $region31: #{gru_decoder_forward.3} parent=5 // pred_region
      %s202 = ssub.s32 %s11, 1
      %s203 = smul.u32 4, %s20
      %p204 = scmp.lt.s32.totalorder %s203, 7
      %s205 = scalar_select %p204, %s203, 7
      %s206 = smul.addr %s205, 4
      %s207 = scalar_lea.vmem %s0, %s206
      %p208 = pneg %p49
      %p209 = pneg %p46
      %p210 = scmp.lt.s32.totalorder %s21, 0
      %s211 = scalar_select %p210, %s21, 0
      %s212 = smul.addr %s211, 4
      %s213 = scalar_lea.vmem %s1, %s212
      %p214 = pneg %p75
      %p215 = pneg %p72
      %p216 = scmp.lt.s32.totalorder %s21, 0
      %s217 = scalar_select %p216, %s21, 0
      %s218 = scalar_lea.vmem %s2, %s217
      %p219 = pneg %p101
      %p220 = pneg %p98
      %p221 = pneg %p129
      %p222 = pneg %p126
      %s223 = smul.u32 4, %s20
      %p224 = scmp.lt.s32.totalorder %s223, 7
      %s225 = scalar_select %p224, %s223, 7
      %p226 = scmp.lt.s32.totalorder %s21, 0
      %s227 = scalar_select %p226, %s21, 0
      %s228 = sadd.s32 %s227, %s225
      %s229 = smul.addr %s228, 8
      %s230 = scalar_lea.vmem %s3, %s229
      %p231 = pneg %p155
      %p232 = pneg %p152
      %s233 = smul.u32 4, %s20
      %p234 = scmp.lt.s32.totalorder %s233, 7
      %s235 = scalar_select %p234, %s233, 7
      %s236 = smul.addr %s235, 8
      %s237 = scalar_lea.vmem %s4, %s236
      %s238 = smul.u32 4, %s20
      %p239 = scmp.lt.s32.totalorder %s238, 7
      %s240 = scalar_select %p239, %s238, 7
      %s241 = smul.addr %s240, 4
      %s242 = scalar_lea.vmem %s0, %s241
      %s243 = smul.u32 4, %s20
      %p244 = scmp.lt.s32.totalorder %s21, 0
      %s245 = scalar_select %p244, %s21, 0
      %s246 = smul.addr %s245, 4
      %s247 = scalar_lea.vmem %s1, %s246
      %p248 = scmp.lt.s32.totalorder %s21, 0
      %s249 = scalar_select %p248, %s21, 0
      %s250 = scalar_lea.vmem %s2, %s249
      %s251 = smul.u32 4, %s20
      %p252 = scmp.lt.s32.totalorder %s251, 7
      %s253 = scalar_select %p252, %s251, 7
      %p254 = scmp.lt.s32.totalorder %s21, 0
      %s255 = scalar_select %p254, %s21, 0
      %s256 = sadd.s32 %s255, %s253
      %s257 = smul.addr %s256, 8
      %s258 = scalar_lea.vmem %s3, %s257
      %s259 = smul.u32 4, %s20
      %s260 = smul.u32 4, %s20
      %p261 = scmp.lt.s32.totalorder %s260, 7
      %s262 = scalar_select %p261, %s260, 7
      %s263 = smul.addr %s262, 8
      %s264 = scalar_lea.vmem %s4, %s263
      %s265 = smul.u32 4, %s20
      %p266 = scmp.eq.s32.totalorder %s21, 0
      // Predicated region
      $region33: #{gru_decoder_forward.3} parent=31 // pred_check
        %p267 = pneg %p266
      $region34: #{gru_decoder_forward.3} parent=31 // pred_check_branch
        %269 = sbr.rel (%p267) target = $region36
      $region35: #{gru_decoder_forward.3} parent=31 // pred_region
        %vm270 = vcmask 7168
        %271 = vst.msk [vmem:[#allocation2] sm:$0xff] %vm270, -inf
        %272 = vst.msk [vmem:[#allocation2 + $0x8] sm:$0xff] %vm270, -inf
        %273 = vst.msk [vmem:[#allocation2 + $0x10] sm:$0xff] %vm270, -inf
        %274 = vst.msk [vmem:[#allocation2 + $0x18] sm:$0xff] %vm270, -inf
        %275 = vst.msk [vmem:[#allocation3] sm:$0xff] %vm270, 0.0
        %276 = vst.msk [vmem:[#allocation3 + $0x8] sm:$0xff] %vm270, 0.0
        %277 = vst.msk [vmem:[#allocation3 + $0x10] sm:$0xff] %vm270, 0.0
        %278 = vst.msk [vmem:[#allocation3 + $0x18] sm:$0xff] %vm270, 0.0
      $region36: #{gru_decoder_forward.3} parent=31 // pred_fallthru
        _
      %v279 = vld [vmem:[%s242] sm:$0xf]
      %v280 = vld [vmem:[%s242 + $0x4] sm:$0xf]
      %v281 = vld [vmem:[%s242 + $0x8] sm:$0xf]
      %v282 = vld [vmem:[%s242 + $0xc] sm:$0xf]
      %v283 = vld [vmem:[%s247] sm:$0xf]
      %v284 = vld [vmem:[%s247 + $0x4] sm:$0xf]
      %v285 = vld [vmem:[%s247 + $0x8] sm:$0xf]
      %v286 = vld [vmem:[%s247 + $0xc] sm:$0xf]
      %v287 = vld [vmem:[%s247 + $0x10] sm:$0xf]
      %v288 = vld [vmem:[%s247 + $0x14] sm:$0xf]
      %v289 = vld [vmem:[%s247 + $0x18] sm:$0xf]
      %v290 = vld [vmem:[%s247 + $0x1c] sm:$0xf]
      %v291 = vld [vmem:[%s247 + $0x20] sm:$0xf]
      %v292 = vld [vmem:[%s247 + $0x24] sm:$0xf]
      %v293 = vld [vmem:[%s247 + $0x28] sm:$0xf]
      %v294 = vld [vmem:[%s247 + $0x2c] sm:$0xf]
      %v295 = vld [vmem:[%s247 + $0x30] sm:$0xf]
      %v296 = vld [vmem:[%s247 + $0x34] sm:$0xf]
      %v297 = vld [vmem:[%s247 + $0x38] sm:$0xf]
      %v298 = vld [vmem:[%s247 + $0x3c] sm:$0xf]
      %v299 = vld [vmem:[%s250] sm:$0x1]
      %v301 = vperm.slane %v299, 0
      %v307 = vunpack.c.l.b16 %v279
      %v308 = vunpack.c.l.b16 %v280
      %v309 = vunpack.c.l.b16 %v281
      %v310 = vunpack.c.l.b16 %v282
      %v311 = vpack.c.b16 %v308, %v307
      %v312 = vpack.c.b16 %v310, %v309
      %v331 = vunpack.c.l.b16 %v283
      %v332 = vunpack.c.l.b16 %v284
      %v333 = vunpack.c.l.b16 %v285
      %v334 = vunpack.c.l.b16 %v286
      %v335 = vunpack.c.l.b16 %v287
      %v336 = vunpack.c.l.b16 %v288
      %v337 = vunpack.c.l.b16 %v289
      %v338 = vunpack.c.l.b16 %v290
      %v339 = vunpack.c.l.b16 %v291
      %v340 = vunpack.c.l.b16 %v292
      %v341 = vunpack.c.l.b16 %v293
      %v342 = vunpack.c.l.b16 %v294
      %v343 = vunpack.c.l.b16 %v295
      %v344 = vunpack.c.l.b16 %v296
      %v345 = vunpack.c.l.b16 %v297
      %v346 = vunpack.c.l.b16 %v298
      %v347 = vpack.c.b16 %v332, %v331
      %v348 = vpack.c.b16 %v334, %v333
      %v349 = vpack.c.b16 %v336, %v335
      %v350 = vpack.c.b16 %v338, %v337
      %v351 = vpack.c.b16 %v340, %v339
      %v352 = vpack.c.b16 %v342, %v341
      %v353 = vpack.c.b16 %v344, %v343
      %v354 = vpack.c.b16 %v346, %v345
      %363 = vmatpush.bf16.msra.mxu0 %v354
      %364 = vmatpush.bf16.msra.mxu0 %v353
      %365 = vmatpush.bf16.msra.mxu0 %v352
      %366 = vmatpush.bf16.msra.mxu0 %v351
      %367 = vmatpush.bf16.msra.mxu0 %v350
      %368 = vmatpush.bf16.msra.mxu0 %v349
      %369 = vmatpush.bf16.msra.mxu0 %v348
      %370 = vmatpush.bf16.msra.mxu0 %v347
      %371 = vmatmul.bf16.gmra.mxu0 %v311
      %v372 = vpop.f32.mrf.mxu0
      %v373 = vadd.f32 %v301, %v372
      %v374 = vpop.f32.mrf.mxu0
      %v375 = vadd.f32 %v301, %v374
      %376 = vmatmul.bf16.gmra.mxu0 %v312
      %v377 = vpop.f32.mrf.mxu0
      %v378 = vadd.f32 %v301, %v377
      %v379 = vpop.f32.mrf.mxu0
      %v380 = vadd.f32 %v301, %v379
      %381 = vdwg.mxu0
      %382 = vst [vmem:[%s258] sm:$0xff] %v373
      %383 = vst [vmem:[%s258 + $0x8] sm:$0xff] %v375
      %384 = vst [vmem:[%s258 + $0x10] sm:$0xff] %v378
      %385 = vst [vmem:[%s258 + $0x18] sm:$0xff] %v380
      %v386 = vld [vmem:[#allocation2] sm:$0xff]
      %v387 = vld [vmem:[#allocation2 + $0x8] sm:$0xff]
      %v388 = vld [vmem:[#allocation2 + $0x10] sm:$0xff]
      %v389 = vld [vmem:[#allocation2 + $0x18] sm:$0xff]
      %390 = vmax.xlane.f32.xlu0 %v373
      %v391 = vpop.xlane.xlu0 %390
      %392 = vmax.xlane.f32.xlu0 %v375
      %v393 = vpop.xlane.xlu0 %392
      %394 = vmax.xlane.f32.xlu0 %v378
      %v395 = vpop.xlane.xlu0 %394
      %396 = vmax.xlane.f32.xlu0 %v380
      %v397 = vpop.xlane.xlu0 %396
      %v398 = vmax.f32 %v386, %v391
      %v399 = vmax.f32 %v387, %v393
      %v400 = vmax.f32 %v388, %v395
      %v401 = vmax.f32 %v389, %v397
      %v402 = vld [vmem:[#allocation3] sm:$0xff]
      %v403 = vld [vmem:[#allocation3 + $0x8] sm:$0xff]
      %v404 = vld [vmem:[#allocation3 + $0x10] sm:$0xff]
      %v405 = vld [vmem:[#allocation3 + $0x18] sm:$0xff]
      %v406 = vsub.f32 %v386, %v398
      %v407 = vsub.f32 %v387, %v399
      %v408 = vsub.f32 %v388, %v400
      %v409 = vsub.f32 %v389, %v401
      %v410 = vmul.f32 %v406, 1.442695
      %v411 = vpow.pop %v410
      %v412 = vmul.f32 %v407, 1.442695
      %v413 = vpow.pop %v412
      %v414 = vmul.f32 %v408, 1.442695
      %v415 = vpow.pop %v414
      %v416 = vmul.f32 %v409, 1.442695
      %v417 = vpow.pop %v416
      %v418 = vmul.f32 %v402, %v411
      %v419 = vmul.f32 %v403, %v413
      %v420 = vmul.f32 %v404, %v415
      %v421 = vmul.f32 %v405, %v417
      %423 = vset.pattern.permute.xlu0 0
      %424 = vperm.xlu0 %423, %v398
      %v425 = vpop.permute.xlu0 %424
      %428 = vset.pattern.permute.xlu0 0
      %429 = vperm.xlu0 %428, %v399
      %v430 = vpop.permute.xlu0 %429
      %433 = vset.pattern.permute.xlu0 0
      %434 = vperm.xlu0 %433, %v400
      %v435 = vpop.permute.xlu0 %434
      %438 = vset.pattern.permute.xlu0 0
      %439 = vperm.xlu0 %438, %v401
      %v440 = vpop.permute.xlu0 %439
      %v442 = vsub.f32 %v373, %v425
      %v443 = vsub.f32 %v375, %v430
      %v444 = vsub.f32 %v378, %v435
      %v445 = vsub.f32 %v380, %v440
      %v446 = vmul.f32 %v442, 1.442695
      %v447 = vpow.pop %v446
      %v448 = vmul.f32 %v443, 1.442695
      %v449 = vpow.pop %v448
      %v450 = vmul.f32 %v444, 1.442695
      %v451 = vpow.pop %v450
      %v452 = vmul.f32 %v445, 1.442695
      %v453 = vpow.pop %v452
      %454 = vadd.xlane.f32.xlu0 %v447
      %v455 = vpop.xlane.xlu0 %454
      %456 = vadd.xlane.f32.xlu0 %v449
      %v457 = vpop.xlane.xlu0 %456
      %458 = vadd.xlane.f32.xlu0 %v451
      %v459 = vpop.xlane.xlu0 %458
      %460 = vadd.xlane.f32.xlu0 %v453
      %v461 = vpop.xlane.xlu0 %460
      %v462 = vadd.f32 %v418, %v455
      %v463 = vadd.f32 %v419, %v457
      %v464 = vadd.f32 %v420, %v459
      %v465 = vadd.f32 %v421, %v461
      %vm466 = vcmask 7168
      %467 = vst.msk [vmem:[#allocation3] sm:$0xff] %vm466, %v462
      %468 = vst.msk [vmem:[#allocation3 + $0x8] sm:$0xff] %vm466, %v463
      %469 = vst.msk [vmem:[#allocation3 + $0x10] sm:$0xff] %vm466, %v464
      %470 = vst.msk [vmem:[#allocation3 + $0x18] sm:$0xff] %vm466, %v465
      %471 = vst.msk [vmem:[#allocation2] sm:$0xff] %vm466, %v398
      %472 = vst.msk [vmem:[#allocation2 + $0x8] sm:$0xff] %vm466, %v399
      %473 = vst.msk [vmem:[#allocation2 + $0x10] sm:$0xff] %vm466, %v400
      %474 = vst.msk [vmem:[#allocation2 + $0x18] sm:$0xff] %vm466, %v401
      // Predicated region
      $region37: #{gru_decoder_forward.3} parent=31 // pred_check
        %p475 = pneg %p266
      $region38: #{gru_decoder_forward.3} parent=31 // pred_check_branch
        %477 = sbr.rel (%p475) target = $region40
      $region39: #{gru_decoder_forward.3} parent=31 // pred_region
        %v478 = vld [vmem:[#allocation2] sm:$0xff]
        %v479 = vld [vmem:[#allocation2 + $0x8] sm:$0xff]
        %v480 = vld [vmem:[#allocation2 + $0x10] sm:$0xff]
        %v481 = vld [vmem:[#allocation2 + $0x18] sm:$0xff]
        %v482 = vld [vmem:[#allocation3] sm:$0xff]
        %v483 = vld [vmem:[#allocation3 + $0x8] sm:$0xff]
        %v484 = vld [vmem:[#allocation3 + $0x10] sm:$0xff]
        %v485 = vld [vmem:[#allocation3 + $0x18] sm:$0xff]
        %v486 = vlog2.pop %v482
        %v487 = vmul.f32 %v486, 0.6931472
        %v488 = vlog2.pop %v483
        %v489 = vmul.f32 %v488, 0.6931472
        %v490 = vlog2.pop %v484
        %v491 = vmul.f32 %v490, 0.6931472
        %v492 = vlog2.pop %v485
        %v493 = vmul.f32 %v492, 0.6931472
        %v494 = vadd.f32 %v478, %v487
        %v495 = vadd.f32 %v479, %v489
        %v496 = vadd.f32 %v480, %v491
        %v497 = vadd.f32 %v481, %v493
        %498 = vst.msk [vmem:[%s264] sm:$0xff] %vm466, %v494
        %499 = vst.msk [vmem:[%s264 + $0x8] sm:$0xff] %vm466, %v495
        %500 = vst.msk [vmem:[%s264 + $0x10] sm:$0xff] %vm466, %v496
        %501 = vst.msk [vmem:[%s264 + $0x18] sm:$0xff] %vm466, %v497
      $region40: #{gru_decoder_forward.3} parent=31 // pred_fallthru
        _
      %s502 = smul.u32 4, %s20
      %p503 = scmp.lt.s32.totalorder %s502, 7
      %s504 = scalar_select %p503, %s502, 7
      %p505 = scmp.lt.s32.totalorder %s21, 0
      %s506 = scalar_select %p505, %s21, 0
      %s507 = sadd.s32 %s506, %s504
      %s508 = smul.addr %s507, 8
      %s509 = scalar_lea.vmem %s3, %s508
      %s510 = smul.u32 4, %s20
      %p511 = scmp.lt.s32.totalorder %s510, 7
      %s512 = scalar_select %p511, %s510, 7
      %s513 = smul.addr %s512, 8
      %s514 = scalar_lea.vmem %s4, %s513
      // Predicated region
      $region41: #{gru_decoder_forward.3} parent=31 // pred_check
        %p515 = pneg %p126
      $region42: #{gru_decoder_forward.3} parent=31 // pred_check_branch
        %517 = sbr.rel (%p515) target = $region44
      $region43: #{gru_decoder_forward.3} parent=31 // pred_region
        %s518 = smul.u32 4, %s20
      $region44: #{gru_decoder_forward.3} parent=31 // pred_fallthru
        _
      // Predicated region
      $region45: #{gru_decoder_forward.3} parent=31 // pred_check
        %p519 = pneg %p152
      $region46: #{gru_decoder_forward.3} parent=31 // pred_check_branch
        %521 = sbr.rel (%p519) target = $region48
      $region47: #{gru_decoder_forward.3} parent=31 // pred_region
        %s522 = smul.u32 4, %s20
      $region48: #{gru_decoder_forward.3} parent=31 // pred_fallthru
        _
    $region32: #{gru_decoder_forward.3} parent=5 // pred_fallthru
      _
    %p523 = scmp.le.s32.totalorder 2, %s11
    // Predicated region
    $region49: #{gru_decoder_forward.3} parent=5 // pred_check
      %p524 = pneg %p523
    $region50: #{gru_decoder_forward.3} parent=5 // pred_check_branch
      %526 = sbr.rel (%p524) target = $region52
    $region51: #{gru_decoder_forward.3} parent=5 // pred_region
      %s527 = ssub.s32 %s11, 2
      // Predicated region
      $region53: #{gru_decoder_forward.3} parent=51 // pred_check
        %p528 = pneg %p132
      $region54: #{gru_decoder_forward.3} parent=51 // pred_check_branch
        %530 = sbr.rel (%p528) target = $region56
      $region55: #{gru_decoder_forward.3} parent=51 // pred_region
        %s531 = smul.u32 4, %s22
        %p532 = scmp.lt.s32.totalorder %s531, 7
        %s533 = scalar_select %p532, %s531, 7
        %p534 = scmp.lt.s32.totalorder %s23, 0
        %s535 = scalar_select %p534, %s23, 0
        %s536 = sadd.s32 %s535, %s533
        %s537 = smul.addr %s536, 8
        %s538 = scalar_lea.vmem %s3, %s537
      $region56: #{gru_decoder_forward.3} parent=51 // pred_fallthru
        _
      // Predicated region
      $region57: #{gru_decoder_forward.3} parent=51 // pred_check
        %p539 = pneg %p158
      $region58: #{gru_decoder_forward.3} parent=51 // pred_check_branch
        %541 = sbr.rel (%p539) target = $region60
      $region59: #{gru_decoder_forward.3} parent=51 // pred_region
        %s542 = smul.u32 4, %s22
        %p543 = scmp.lt.s32.totalorder %s542, 7
        %s544 = scalar_select %p543, %s542, 7
        %s545 = smul.addr %s544, 8
        %s546 = scalar_lea.vmem %s4, %s545
      $region60: #{gru_decoder_forward.3} parent=51 // pred_fallthru
        _
    $region52: #{gru_decoder_forward.3} parent=5 // pred_fallthru
      _
  $region6: #{gru_decoder_forward.3} parent=0 // loop_footer
    %s15 = sadd.s32 1, %s11
  $region7: #{gru_decoder_forward.3} parent=0 // loop_footer_branch
    %10 = sbr.rel target = $region3
  $region8: #{gru_decoder_forward.3} parent=0 // loop_exit
    _

// kernel: gru_decoder_forward.2
$region0: #{gru_decoder_forward.2}
  #allocation0 [shape = 'u32[]', space=smem, size = 0x4, offset = 0x4, fixed_abs, tag = 'smem constant byte address 0x4 - core index']
  #allocation1 [shape = 'u32[72,128]{1,0:T(1,128)}', space=vmem, size = 0x9000, scoped, tag = 'internal scratch']
  #allocation2 [shape = 'f32[8,128]{1,0:T(8,128)}', space=vmem, size = 0x1000, scoped, tag = 'scratch operand']
  %s0 = inlined_call_operand.vmem [shape: bf16[8,8,384], index: 0, kind: input, shape index: {}]
  %s1 = inlined_call_operand.vmem [shape: f32[8,128], index: 1, kind: input, shape index: {}]
  %s2 = inlined_call_operand.vmem [shape: bf16[128,384], index: 2, kind: input, shape index: {}]
  %s3 = inlined_call_operand.vmem [shape: f32[1,128], index: 3, kind: input, shape index: {}]
  %s4 = inlined_call_operand.vmem [shape: bf16[8,8,128], index: 4, kind: output, shape index: {0}]
  %s5 = inlined_call_operand.vmem [shape: f32[8,128], index: 5, kind: output, shape index: {1}]
  %6 = xla_tuple %s4, %s5
  %s7 = sld [smem:[#allocation0]]
  $region42: #{gru_decoder_forward.2} parent=0
    _
  %s9 = ssub.s32 1, %s7
  %s10 = scalar_select 0, %s9, %s7
  // Predicated region
  $region2: #{gru_decoder_forward.2} parent=0 // pred_check
    _
  $region3: #{gru_decoder_forward.2} parent=0 // pred_check_branch
    %12 = sbr.rel (0) target = $region5
  $region4: #{gru_decoder_forward.2} parent=0 // pred_region
    _
  $region5: #{gru_decoder_forward.2} parent=0 // pred_fallthru
    _
  // Predicated region
  $region6: #{gru_decoder_forward.2} parent=0 // pred_check
    _
  $region7: #{gru_decoder_forward.2} parent=0 // pred_check_branch
    %14 = sbr.rel (0) target = $region9
  $region8: #{gru_decoder_forward.2} parent=0 // pred_region
    _
  $region9: #{gru_decoder_forward.2} parent=0 // pred_fallthru
    _
  // Predicated region
  $region10: #{gru_decoder_forward.2} parent=0 // pred_check
    _
  $region11: #{gru_decoder_forward.2} parent=0 // pred_check_branch
    %16 = sbr.rel (0) target = $region13
  $region12: #{gru_decoder_forward.2} parent=0 // pred_region
    _
  $region13: #{gru_decoder_forward.2} parent=0 // pred_fallthru
    _
  // Predicated region
  $region14: #{gru_decoder_forward.2} parent=0 // pred_check
    _
  $region15: #{gru_decoder_forward.2} parent=0 // pred_check_branch
    %18 = sbr.rel (0) target = $region17
  $region16: #{gru_decoder_forward.2} parent=0 // pred_region
    _
  $region17: #{gru_decoder_forward.2} parent=0 // pred_fallthru
    _
  %p19 = scmp.eq.s32.totalorder 0, 0
  // Predicated region
  $region18: #{gru_decoder_forward.2} parent=0 // pred_check
    %p20 = pneg %p19
  $region19: #{gru_decoder_forward.2} parent=0 // pred_check_branch
    %22 = sbr.rel (%p20) target = $region21
  $region20: #{gru_decoder_forward.2} parent=0 // pred_region
    %v23 = vld [vmem:[%s1] sm:$0xff]
    %24 = vst [vmem:[#allocation2] sm:$0xff] %v23
  $region21: #{gru_decoder_forward.2} parent=0 // pred_fallthru
    _
  %v25 = vld [vmem:[%s2] sm:$0xff]
  %v26 = vld [vmem:[%s2 + $0x8] sm:$0xf]
  %v27 = vld [vmem:[%s2 + $0xc] sm:$0xff]
  %v28 = vld [vmem:[%s2 + $0x14] sm:$0xf]
  %v29 = vld [vmem:[%s2 + $0x18] sm:$0xff]
  %v30 = vld [vmem:[%s2 + $0x20] sm:$0xf]
  %v31 = vld [vmem:[%s2 + $0x24] sm:$0xff]
  %v32 = vld [vmem:[%s2 + $0x2c] sm:$0xf]
  %v33 = vld [vmem:[%s2 + $0x30] sm:$0xff]
  %v34 = vld [vmem:[%s2 + $0x38] sm:$0xf]
  %v35 = vld [vmem:[%s2 + $0x3c] sm:$0xff]
  %v36 = vld [vmem:[%s2 + $0x44] sm:$0xf]
  %v37 = vld [vmem:[%s2 + $0x48] sm:$0xff]
  %v38 = vld [vmem:[%s2 + $0x50] sm:$0xf]
  %v39 = vld [vmem:[%s2 + $0x54] sm:$0xff]
  %v40 = vld [vmem:[%s2 + $0x5c] sm:$0xf]
  %v41 = vld [vmem:[%s2 + $0x60] sm:$0xff]
  %v42 = vld [vmem:[%s2 + $0x68] sm:$0xf]
  %v43 = vld [vmem:[%s2 + $0x6c] sm:$0xff]
  %v44 = vld [vmem:[%s2 + $0x74] sm:$0xf]
  %v45 = vld [vmem:[%s2 + $0x78] sm:$0xff]
  %v46 = vld [vmem:[%s2 + $0x80] sm:$0xf]
  %v47 = vld [vmem:[%s2 + $0x84] sm:$0xff]
  %v48 = vld [vmem:[%s2 + $0x8c] sm:$0xf]
  %v49 = vld [vmem:[%s2 + $0x90] sm:$0xff]
  %v50 = vld [vmem:[%s2 + $0x98] sm:$0xf]
  %v51 = vld [vmem:[%s2 + $0x9c] sm:$0xff]
  %v52 = vld [vmem:[%s2 + $0xa4] sm:$0xf]
  %v53 = vld [vmem:[%s2 + $0xa8] sm:$0xff]
  %v54 = vld [vmem:[%s2 + $0xb0] sm:$0xf]
  %v55 = vld [vmem:[%s2 + $0xb4] sm:$0xff]
  %v56 = vld [vmem:[%s2 + $0xbc] sm:$0xf]
  %v57 = vld [vmem:[%s3] sm:$0x1]
  %v58 = vld [vmem:[#allocation2] sm:$0xff]
  %v59 = vld [vmem:[%s0] sm:$0xff]
  %v60 = vld [vmem:[%s0 + $0x8] sm:$0xf]
  %v61 = vunpack.c.l.bf16 %v59
  %v62 = vunpack.c.h.bf16 %v59
  %v63 = vunpack.c.l.bf16 %v60
  %v64 = vpack.c.bf16 %v58, %v58
  %v97 = vunpack.c.l.b16 %v25
  %v98 = vunpack.c.h.b16 %v25
  %v99 = vunpack.c.l.b16 %v26
  %v100 = vunpack.c.l.b16 %v27
  %v101 = vunpack.c.h.b16 %v27
  %v102 = vunpack.c.l.b16 %v28
  %v103 = vunpack.c.l.b16 %v29
  %v104 = vunpack.c.h.b16 %v29
  %v105 = vunpack.c.l.b16 %v30
  %v106 = vunpack.c.l.b16 %v31
  %v107 = vunpack.c.h.b16 %v31
  %v108 = vunpack.c.l.b16 %v32
  %v109 = vunpack.c.l.b16 %v33
  %v110 = vunpack.c.h.b16 %v33
  %v111 = vunpack.c.l.b16 %v34
  %v112 = vunpack.c.l.b16 %v35
  %v113 = vunpack.c.h.b16 %v35
  %v114 = vunpack.c.l.b16 %v36
  %v115 = vunpack.c.l.b16 %v37
  %v116 = vunpack.c.h.b16 %v37
  %v117 = vunpack.c.l.b16 %v38
  %v118 = vunpack.c.l.b16 %v39
  %v119 = vunpack.c.h.b16 %v39
  %v120 = vunpack.c.l.b16 %v40
  %v121 = vunpack.c.l.b16 %v41
  %v122 = vunpack.c.h.b16 %v41
  %v123 = vunpack.c.l.b16 %v42
  %v124 = vunpack.c.l.b16 %v43
  %v125 = vunpack.c.h.b16 %v43
  %v126 = vunpack.c.l.b16 %v44
  %v127 = vunpack.c.l.b16 %v45
  %v128 = vunpack.c.h.b16 %v45
  %v129 = vunpack.c.l.b16 %v46
  %v130 = vunpack.c.l.b16 %v47
  %v131 = vunpack.c.h.b16 %v47
  %v132 = vunpack.c.l.b16 %v48
  %v133 = vunpack.c.l.b16 %v49
  %v134 = vunpack.c.h.b16 %v49
  %v135 = vunpack.c.l.b16 %v50
  %v136 = vunpack.c.l.b16 %v51
  %v137 = vunpack.c.h.b16 %v51
  %v138 = vunpack.c.l.b16 %v52
  %v139 = vunpack.c.l.b16 %v53
  %v140 = vunpack.c.h.b16 %v53
  %v141 = vunpack.c.l.b16 %v54
  %v142 = vunpack.c.l.b16 %v55
  %v143 = vunpack.c.h.b16 %v55
  %v144 = vunpack.c.l.b16 %v56
  %v145 = vpack.c.b16 %v100, %v97
  %v146 = vpack.c.b16 %v101, %v98
  %v147 = vpack.c.b16 %v102, %v99
  %v148 = vpack.c.b16 %v106, %v103
  %v149 = vpack.c.b16 %v107, %v104
  %v150 = vpack.c.b16 %v108, %v105
  %v151 = vpack.c.b16 %v112, %v109
  %v152 = vpack.c.b16 %v113, %v110
  %v153 = vpack.c.b16 %v114, %v111
  %v154 = vpack.c.b16 %v118, %v115
  %v155 = vpack.c.b16 %v119, %v116
  %v156 = vpack.c.b16 %v120, %v117
  %v157 = vpack.c.b16 %v124, %v121
  %v158 = vpack.c.b16 %v125, %v122
  %v159 = vpack.c.b16 %v126, %v123
  %v160 = vpack.c.b16 %v130, %v127
  %v161 = vpack.c.b16 %v131, %v128
  %v162 = vpack.c.b16 %v132, %v129
  %v163 = vpack.c.b16 %v136, %v133
  %v164 = vpack.c.b16 %v137, %v134
  %v165 = vpack.c.b16 %v138, %v135
  %v166 = vpack.c.b16 %v142, %v139
  %v167 = vpack.c.b16 %v143, %v140
  %v168 = vpack.c.b16 %v144, %v141
  %193 = vmatpush.bf16.msra.mxu0 %v166
  %194 = vmatpush.bf16.msra.mxu0 %v163
  %195 = vmatpush.bf16.msra.mxu0 %v160
  %196 = vmatpush.bf16.msra.mxu0 %v157
  %197 = vmatpush.bf16.msra.mxu0 %v154
  %198 = vmatpush.bf16.msra.mxu0 %v151
  %199 = vmatpush.bf16.msra.mxu0 %v148
  %200 = vmatpush.bf16.msra.mxu0 %v145
  %201 = vmatmul.bf16.gmra.mxu0 %v64
  %v202 = vpop.f32.mrf.mxu0
  %v203 = vadd.f32 0.0, %v202
  %v204 = vpop.f32.mrf.mxu0
  %205 = vdwg.mxu0
  %206 = vmatpush.bf16.msra.mxu0 %v167
  %207 = vmatpush.bf16.msra.mxu0 %v164
  %208 = vmatpush.bf16.msra.mxu0 %v161
  %209 = vmatpush.bf16.msra.mxu0 %v158
  %210 = vmatpush.bf16.msra.mxu0 %v155
  %211 = vmatpush.bf16.msra.mxu0 %v152
  %212 = vmatpush.bf16.msra.mxu0 %v149
  %213 = vmatpush.bf16.msra.mxu0 %v146
  %214 = vmatmul.bf16.gmra.mxu0 %v64
  %v215 = vpop.f32.mrf.mxu0
  %v216 = vadd.f32 0.0, %v215
  %v217 = vpop.f32.mrf.mxu0
  %218 = vdwg.mxu0
  %219 = vmatpush.bf16.msra.mxu0 %v168
  %220 = vmatpush.bf16.msra.mxu0 %v165
  %221 = vmatpush.bf16.msra.mxu0 %v162
  %222 = vmatpush.bf16.msra.mxu0 %v159
  %223 = vmatpush.bf16.msra.mxu0 %v156
  %224 = vmatpush.bf16.msra.mxu0 %v153
  %225 = vmatpush.bf16.msra.mxu0 %v150
  %226 = vmatpush.bf16.msra.mxu0 %v147
  %227 = vmatmul.bf16.gmra.mxu0 %v64
  %v228 = vpop.f32.mrf.mxu0
  %v229 = vadd.f32 0.0, %v228
  %v230 = vpop.f32.mrf.mxu0
  %231 = vdwg.mxu0
  %v232 = vadd.f32 %v61, %v203
  %v233 = vxor.u32 %v232, 2147483648
  %v234 = vmul.f32 %v233, 1.442695
  %v235 = vpow.pop %v234
  %v236 = vadd.f32 %v235, 1.0
  %v237 = vrcp.pop %v236
  %v238 = vmul.f32 %v236, %v237
  %v239 = vsub.f32 1.0, %v238
  %v240 = vmul.f32 %v237, %v239
  %v241 = vadd.f32 %v237, %v240
  %vm242 = vweird.f32 %v236
  %vm243 = vweird.f32 %v237
  %vm244 = vmor %vm242, %vm243
  %v245 = vsel %vm244, %v237, %v241
  %v246 = vand.u32 2147483647, %v236
  %vm247 = vcmp.eq.f32.partialorder %v246, 8.507059e+37
  %v248 = vand.u32 %v236, 2147483648
  %v249 = vor.u32 1.1754944e-38, %v248
  %v250 = vsel %vm247, %v249, %v245
  %v251 = vmul.f32 1.0, %v250
  %v252 = vadd.f32 %v62, %v216
  %v253 = vxor.u32 %v252, 2147483648
  %v254 = vmul.f32 %v253, 1.442695
  %v255 = vpow.pop %v254
  %v256 = vadd.f32 %v255, 1.0
  %v257 = vrcp.pop %v256
  %v258 = vmul.f32 %v256, %v257
  %v259 = vsub.f32 1.0, %v258
  %v260 = vmul.f32 %v257, %v259
  %v261 = vadd.f32 %v257, %v260
  %vm262 = vweird.f32 %v256
  %vm263 = vweird.f32 %v257
  %vm264 = vmor %vm262, %vm263
  %v265 = vsel %vm264, %v257, %v261
  %v266 = vand.u32 2147483647, %v256
  %vm267 = vcmp.eq.f32.partialorder %v266, 8.507059e+37
  %v268 = vand.u32 %v256, 2147483648
  %v269 = vor.u32 1.1754944e-38, %v268
  %v270 = vsel %vm267, %v269, %v265
  %v271 = vmul.f32 1.0, %v270
  %v273 = vperm.slane %v57, 0
  %v275 = vadd.f32 %v229, %v273
  %v276 = vmul.f32 %v251, %v275
  %v277 = vadd.f32 %v63, %v276
  %v278 = vtanh.pop %v277
  %v279 = vsub.f32 1.0, %v271
  %v280 = vmul.f32 %v279, %v278
  %v281 = vmul.f32 %v271, %v58
  %v282 = vadd.f32 %v280, %v281
  %283 = vst [vmem:[#allocation2] sm:$0xff] %v282
  %v284 = vpack.c.bf16 %v282, %v282
  %285 = vst [vmem:[%s4] sm:$0xf] %v284
  %v286 = vld [vmem:[#allocation2] sm:$0xff]
  %s287 = scalar_lea.vmem %s0, 12
  %v288 = vld [vmem:[%s287] sm:$0xff]
  %v289 = vld [vmem:[%s287 + $0x8] sm:$0xf]
  %v290 = vunpack.c.l.bf16 %v288
  %v291 = vunpack.c.h.bf16 %v288
  %v292 = vunpack.c.l.bf16 %v289
  %v293 = vpack.c.bf16 %v286, %v286
  %294 = vmatpush.bf16.msra.mxu0 %v166
  %295 = vmatpush.bf16.msra.mxu0 %v163
  %296 = vmatpush.bf16.msra.mxu0 %v160
  %297 = vmatpush.bf16.msra.mxu0 %v157
  %298 = vmatpush.bf16.msra.mxu0 %v154
  %299 = vmatpush.bf16.msra.mxu0 %v151
  %300 = vmatpush.bf16.msra.mxu0 %v148
  %301 = vmatpush.bf16.msra.mxu0 %v145
  %302 = vmatmul.bf16.gmra.mxu0 %v293
  %v303 = vpop.f32.mrf.mxu0
  %v304 = vadd.f32 0.0, %v303
  %v305 = vpop.f32.mrf.mxu0
  %306 = vdwg.mxu0
  %307 = vmatpush.bf16.msra.mxu0 %v167
  %308 = vmatpush.bf16.msra.mxu0 %v164
  %309 = vmatpush.bf16.msra.mxu0 %v161
  %310 = vmatpush.bf16.msra.mxu0 %v158
  %311 = vmatpush.bf16.msra.mxu0 %v155
  %312 = vmatpush.bf16.msra.mxu0 %v152
  %313 = vmatpush.bf16.msra.mxu0 %v149
  %314 = vmatpush.bf16.msra.mxu0 %v146
  %315 = vmatmul.bf16.gmra.mxu0 %v293
  %v316 = vpop.f32.mrf.mxu0
  %v317 = vadd.f32 0.0, %v316
  %v318 = vpop.f32.mrf.mxu0
  %319 = vdwg.mxu0
  %320 = vmatpush.bf16.msra.mxu0 %v168
  %321 = vmatpush.bf16.msra.mxu0 %v165
  %322 = vmatpush.bf16.msra.mxu0 %v162
  %323 = vmatpush.bf16.msra.mxu0 %v159
  %324 = vmatpush.bf16.msra.mxu0 %v156
  %325 = vmatpush.bf16.msra.mxu0 %v153
  %326 = vmatpush.bf16.msra.mxu0 %v150
  %327 = vmatpush.bf16.msra.mxu0 %v147
  %328 = vmatmul.bf16.gmra.mxu0 %v293
  %v329 = vpop.f32.mrf.mxu0
  %v330 = vadd.f32 0.0, %v329
  %v331 = vpop.f32.mrf.mxu0
  %332 = vdwg.mxu0
  %v333 = vadd.f32 %v290, %v304
  %v334 = vxor.u32 %v333, 2147483648
  %v335 = vmul.f32 %v334, 1.442695
  %v336 = vpow.pop %v335
  %v337 = vadd.f32 %v336, 1.0
  %v338 = vrcp.pop %v337
  %v339 = vmul.f32 %v337, %v338
  %v340 = vsub.f32 1.0, %v339
  %v341 = vmul.f32 %v338, %v340
  %v342 = vadd.f32 %v338, %v341
  %vm343 = vweird.f32 %v337
  %vm344 = vweird.f32 %v338
  %vm345 = vmor %vm343, %vm344
  %v346 = vsel %vm345, %v338, %v342
  %v347 = vand.u32 2147483647, %v337
  %vm348 = vcmp.eq.f32.partialorder %v347, 8.507059e+37
  %v349 = vand.u32 %v337, 2147483648
  %v350 = vor.u32 1.1754944e-38, %v349
  %v351 = vsel %vm348, %v350, %v346
  %v352 = vmul.f32 1.0, %v351
  %v353 = vadd.f32 %v291, %v317
  %v354 = vxor.u32 %v353, 2147483648
  %v355 = vmul.f32 %v354, 1.442695
  %v356 = vpow.pop %v355
  %v357 = vadd.f32 %v356, 1.0
  %v358 = vrcp.pop %v357
  %v359 = vmul.f32 %v357, %v358
  %v360 = vsub.f32 1.0, %v359
  %v361 = vmul.f32 %v358, %v360
  %v362 = vadd.f32 %v358, %v361
  %vm363 = vweird.f32 %v357
  %vm364 = vweird.f32 %v358
  %vm365 = vmor %vm363, %vm364
  %v366 = vsel %vm365, %v358, %v362
  %v367 = vand.u32 2147483647, %v357
  %vm368 = vcmp.eq.f32.partialorder %v367, 8.507059e+37
  %v369 = vand.u32 %v357, 2147483648
  %v370 = vor.u32 1.1754944e-38, %v369
  %v371 = vsel %vm368, %v370, %v366
  %v372 = vmul.f32 1.0, %v371
  %v373 = vadd.f32 %v330, %v273
  %v374 = vmul.f32 %v352, %v373
  %v375 = vadd.f32 %v292, %v374
  %v376 = vtanh.pop %v375
  %v377 = vsub.f32 1.0, %v372
  %v378 = vmul.f32 %v377, %v376
  %v379 = vmul.f32 %v372, %v286
  %v380 = vadd.f32 %v378, %v379
  %381 = vst [vmem:[#allocation2] sm:$0xff] %v380
  %v382 = vpack.c.bf16 %v380, %v380
  %s383 = scalar_lea.vmem %s4, 4
  %384 = vst [vmem:[%s383] sm:$0xf] %v382
  %v385 = vld [vmem:[#allocation2] sm:$0xff]
  %s386 = scalar_lea.vmem %s0, 24
  %v387 = vld [vmem:[%s386] sm:$0xff]
  %v388 = vld [vmem:[%s386 + $0x8] sm:$0xf]
  %v389 = vunpack.c.l.bf16 %v387
  %v390 = vunpack.c.h.bf16 %v387
  %v391 = vunpack.c.l.bf16 %v388
  %v392 = vpack.c.bf16 %v385, %v385
  %393 = vmatpush.bf16.msra.mxu0 %v166
  %394 = vmatpush.bf16.msra.mxu0 %v163
  %395 = vmatpush.bf16.msra.mxu0 %v160
  %396 = vmatpush.bf16.msra.mxu0 %v157
  %397 = vmatpush.bf16.msra.mxu0 %v154
  %398 = vmatpush.bf16.msra.mxu0 %v151
  %399 = vmatpush.bf16.msra.mxu0 %v148
  %400 = vmatpush.bf16.msra.mxu0 %v145
  %401 = vmatmul.bf16.gmra.mxu0 %v392
  %v402 = vpop.f32.mrf.mxu0
  %v403 = vadd.f32 0.0, %v402
  %v404 = vpop.f32.mrf.mxu0
  %405 = vdwg.mxu0
  %406 = vmatpush.bf16.msra.mxu0 %v167
  %407 = vmatpush.bf16.msra.mxu0 %v164
  %408 = vmatpush.bf16.msra.mxu0 %v161
  %409 = vmatpush.bf16.msra.mxu0 %v158
  %410 = vmatpush.bf16.msra.mxu0 %v155
  %411 = vmatpush.bf16.msra.mxu0 %v152
  %412 = vmatpush.bf16.msra.mxu0 %v149
  %413 = vmatpush.bf16.msra.mxu0 %v146
  %414 = vmatmul.bf16.gmra.mxu0 %v392
  %v415 = vpop.f32.mrf.mxu0
  %v416 = vadd.f32 0.0, %v415
  %v417 = vpop.f32.mrf.mxu0
  %418 = vdwg.mxu0
  %419 = vmatpush.bf16.msra.mxu0 %v168
  %420 = vmatpush.bf16.msra.mxu0 %v165
  %421 = vmatpush.bf16.msra.mxu0 %v162
  %422 = vmatpush.bf16.msra.mxu0 %v159
  %423 = vmatpush.bf16.msra.mxu0 %v156
  %424 = vmatpush.bf16.msra.mxu0 %v153
  %425 = vmatpush.bf16.msra.mxu0 %v150
  %426 = vmatpush.bf16.msra.mxu0 %v147
  %427 = vmatmul.bf16.gmra.mxu0 %v392
  %v428 = vpop.f32.mrf.mxu0
  %v429 = vadd.f32 0.0, %v428
  %v430 = vpop.f32.mrf.mxu0
  %431 = vdwg.mxu0
  %v432 = vadd.f32 %v389, %v403
  %v433 = vxor.u32 %v432, 2147483648
  %v434 = vmul.f32 %v433, 1.442695
  %v435 = vpow.pop %v434
  %v436 = vadd.f32 %v435, 1.0
  %v437 = vrcp.pop %v436
  %v438 = vmul.f32 %v436, %v437
  %v439 = vsub.f32 1.0, %v438
  %v440 = vmul.f32 %v437, %v439
  %v441 = vadd.f32 %v437, %v440
  %vm442 = vweird.f32 %v436
  %vm443 = vweird.f32 %v437
  %vm444 = vmor %vm442, %vm443
  %v445 = vsel %vm444, %v437, %v441
  %v446 = vand.u32 2147483647, %v436
  %vm447 = vcmp.eq.f32.partialorder %v446, 8.507059e+37
  %v448 = vand.u32 %v436, 2147483648
  %v449 = vor.u32 1.1754944e-38, %v448
  %v450 = vsel %vm447, %v449, %v445
  %v451 = vmul.f32 1.0, %v450
  %v452 = vadd.f32 %v390, %v416
  %v453 = vxor.u32 %v452, 2147483648
  %v454 = vmul.f32 %v453, 1.442695
  %v455 = vpow.pop %v454
  %v456 = vadd.f32 %v455, 1.0
  %v457 = vrcp.pop %v456
  %v458 = vmul.f32 %v456, %v457
  %v459 = vsub.f32 1.0, %v458
  %v460 = vmul.f32 %v457, %v459
  %v461 = vadd.f32 %v457, %v460
  %vm462 = vweird.f32 %v456
  %vm463 = vweird.f32 %v457
  %vm464 = vmor %vm462, %vm463
  %v465 = vsel %vm464, %v457, %v461
  %v466 = vand.u32 2147483647, %v456
  %vm467 = vcmp.eq.f32.partialorder %v466, 8.507059e+37
  %v468 = vand.u32 %v456, 2147483648
  %v469 = vor.u32 1.1754944e-38, %v468
  %v470 = vsel %vm467, %v469, %v465
  %v471 = vmul.f32 1.0, %v470
  %v472 = vadd.f32 %v429, %v273
  %v473 = vmul.f32 %v451, %v472
  %v474 = vadd.f32 %v391, %v473
  %v475 = vtanh.pop %v474
  %v476 = vsub.f32 1.0, %v471
  %v477 = vmul.f32 %v476, %v475
  %v478 = vmul.f32 %v471, %v385
  %v479 = vadd.f32 %v477, %v478
  %480 = vst [vmem:[#allocation2] sm:$0xff] %v479
  %v481 = vpack.c.bf16 %v479, %v479
  %s482 = scalar_lea.vmem %s4, 8
  %483 = vst [vmem:[%s482] sm:$0xf] %v481
  %v484 = vld [vmem:[#allocation2] sm:$0xff]
  %s485 = scalar_lea.vmem %s0, 36
  %v486 = vld [vmem:[%s485] sm:$0xff]
  %v487 = vld [vmem:[%s485 + $0x8] sm:$0xf]
  %v488 = vunpack.c.l.bf16 %v486
  %v489 = vunpack.c.h.bf16 %v486
  %v490 = vunpack.c.l.bf16 %v487
  %v491 = vpack.c.bf16 %v484, %v484
  %492 = vmatpush.bf16.msra.mxu0 %v166
  %493 = vmatpush.bf16.msra.mxu0 %v163
  %494 = vmatpush.bf16.msra.mxu0 %v160
  %495 = vmatpush.bf16.msra.mxu0 %v157
  %496 = vmatpush.bf16.msra.mxu0 %v154
  %497 = vmatpush.bf16.msra.mxu0 %v151
  %498 = vmatpush.bf16.msra.mxu0 %v148
  %499 = vmatpush.bf16.msra.mxu0 %v145
  %500 = vmatmul.bf16.gmra.mxu0 %v491
  %v501 = vpop.f32.mrf.mxu0
  %v502 = vadd.f32 0.0, %v501
  %v503 = vpop.f32.mrf.mxu0
  %504 = vdwg.mxu0
  %505 = vmatpush.bf16.msra.mxu0 %v167
  %506 = vmatpush.bf16.msra.mxu0 %v164
  %507 = vmatpush.bf16.msra.mxu0 %v161
  %508 = vmatpush.bf16.msra.mxu0 %v158
  %509 = vmatpush.bf16.msra.mxu0 %v155
  %510 = vmatpush.bf16.msra.mxu0 %v152
  %511 = vmatpush.bf16.msra.mxu0 %v149
  %512 = vmatpush.bf16.msra.mxu0 %v146
  %513 = vmatmul.bf16.gmra.mxu0 %v491
  %v514 = vpop.f32.mrf.mxu0
  %v515 = vadd.f32 0.0, %v514
  %v516 = vpop.f32.mrf.mxu0
  %517 = vdwg.mxu0
  %518 = vmatpush.bf16.msra.mxu0 %v168
  %519 = vmatpush.bf16.msra.mxu0 %v165
  %520 = vmatpush.bf16.msra.mxu0 %v162
  %521 = vmatpush.bf16.msra.mxu0 %v159
  %522 = vmatpush.bf16.msra.mxu0 %v156
  %523 = vmatpush.bf16.msra.mxu0 %v153
  %524 = vmatpush.bf16.msra.mxu0 %v150
  %525 = vmatpush.bf16.msra.mxu0 %v147
  %526 = vmatmul.bf16.gmra.mxu0 %v491
  %v527 = vpop.f32.mrf.mxu0
  %v528 = vadd.f32 0.0, %v527
  %v529 = vpop.f32.mrf.mxu0
  %530 = vdwg.mxu0
  %v531 = vadd.f32 %v488, %v502
  %v532 = vxor.u32 %v531, 2147483648
  %v533 = vmul.f32 %v532, 1.442695
  %v534 = vpow.pop %v533
  %v535 = vadd.f32 %v534, 1.0
  %v536 = vrcp.pop %v535
  %v537 = vmul.f32 %v535, %v536
  %v538 = vsub.f32 1.0, %v537
  %v539 = vmul.f32 %v536, %v538
  %v540 = vadd.f32 %v536, %v539
  %vm541 = vweird.f32 %v535
  %vm542 = vweird.f32 %v536
  %vm543 = vmor %vm541, %vm542
  %v544 = vsel %vm543, %v536, %v540
  %v545 = vand.u32 2147483647, %v535
  %vm546 = vcmp.eq.f32.partialorder %v545, 8.507059e+37
  %v547 = vand.u32 %v535, 2147483648
  %v548 = vor.u32 1.1754944e-38, %v547
  %v549 = vsel %vm546, %v548, %v544
  %v550 = vmul.f32 1.0, %v549
  %v551 = vadd.f32 %v489, %v515
  %v552 = vxor.u32 %v551, 2147483648
  %v553 = vmul.f32 %v552, 1.442695
  %v554 = vpow.pop %v553
  %v555 = vadd.f32 %v554, 1.0
  %v556 = vrcp.pop %v555
  %v557 = vmul.f32 %v555, %v556
  %v558 = vsub.f32 1.0, %v557
  %v559 = vmul.f32 %v556, %v558
  %v560 = vadd.f32 %v556, %v559
  %vm561 = vweird.f32 %v555
  %vm562 = vweird.f32 %v556
  %vm563 = vmor %vm561, %vm562
  %v564 = vsel %vm563, %v556, %v560
  %v565 = vand.u32 2147483647, %v555
  %vm566 = vcmp.eq.f32.partialorder %v565, 8.507059e+37
  %v567 = vand.u32 %v555, 2147483648
  %v568 = vor.u32 1.1754944e-38, %v567
  %v569 = vsel %vm566, %v568, %v564
  %v570 = vmul.f32 1.0, %v569
  %v571 = vadd.f32 %v528, %v273
  %v572 = vmul.f32 %v550, %v571
  %v573 = vadd.f32 %v490, %v572
  %v574 = vtanh.pop %v573
  %v575 = vsub.f32 1.0, %v570
  %v576 = vmul.f32 %v575, %v574
  %v577 = vmul.f32 %v570, %v484
  %v578 = vadd.f32 %v576, %v577
  %579 = vst [vmem:[#allocation2] sm:$0xff] %v578
  %v580 = vpack.c.bf16 %v578, %v578
  %s581 = scalar_lea.vmem %s4, 12
  %582 = vst [vmem:[%s581] sm:$0xf] %v580
  %v583 = vld [vmem:[#allocation2] sm:$0xff]
  %s584 = scalar_lea.vmem %s0, 48
  %v585 = vld [vmem:[%s584] sm:$0xff]
  %v586 = vld [vmem:[%s584 + $0x8] sm:$0xf]
  %v587 = vunpack.c.l.bf16 %v585
  %v588 = vunpack.c.h.bf16 %v585
  %v589 = vunpack.c.l.bf16 %v586
  %v590 = vpack.c.bf16 %v583, %v583
  %591 = vmatpush.bf16.msra.mxu0 %v166
  %592 = vmatpush.bf16.msra.mxu0 %v163
  %593 = vmatpush.bf16.msra.mxu0 %v160
  %594 = vmatpush.bf16.msra.mxu0 %v157
  %595 = vmatpush.bf16.msra.mxu0 %v154
  %596 = vmatpush.bf16.msra.mxu0 %v151
  %597 = vmatpush.bf16.msra.mxu0 %v148
  %598 = vmatpush.bf16.msra.mxu0 %v145
  %599 = vmatmul.bf16.gmra.mxu0 %v590
  %v600 = vpop.f32.mrf.mxu0
  %v601 = vadd.f32 0.0, %v600
  %v602 = vpop.f32.mrf.mxu0
  %603 = vdwg.mxu0
  %604 = vmatpush.bf16.msra.mxu0 %v167
  %605 = vmatpush.bf16.msra.mxu0 %v164
  %606 = vmatpush.bf16.msra.mxu0 %v161
  %607 = vmatpush.bf16.msra.mxu0 %v158
  %608 = vmatpush.bf16.msra.mxu0 %v155
  %609 = vmatpush.bf16.msra.mxu0 %v152
  %610 = vmatpush.bf16.msra.mxu0 %v149
  %611 = vmatpush.bf16.msra.mxu0 %v146
  %612 = vmatmul.bf16.gmra.mxu0 %v590
  %v613 = vpop.f32.mrf.mxu0
  %v614 = vadd.f32 0.0, %v613
  %v615 = vpop.f32.mrf.mxu0
  %616 = vdwg.mxu0
  %617 = vmatpush.bf16.msra.mxu0 %v168
  %618 = vmatpush.bf16.msra.mxu0 %v165
  %619 = vmatpush.bf16.msra.mxu0 %v162
  %620 = vmatpush.bf16.msra.mxu0 %v159
  %621 = vmatpush.bf16.msra.mxu0 %v156
  %622 = vmatpush.bf16.msra.mxu0 %v153
  %623 = vmatpush.bf16.msra.mxu0 %v150
  %624 = vmatpush.bf16.msra.mxu0 %v147
  %625 = vmatmul.bf16.gmra.mxu0 %v590
  %v626 = vpop.f32.mrf.mxu0
  %v627 = vadd.f32 0.0, %v626
  %v628 = vpop.f32.mrf.mxu0
  %629 = vdwg.mxu0
  %v630 = vadd.f32 %v587, %v601
  %v631 = vxor.u32 %v630, 2147483648
  %v632 = vmul.f32 %v631, 1.442695
  %v633 = vpow.pop %v632
  %v634 = vadd.f32 %v633, 1.0
  %v635 = vrcp.pop %v634
  %v636 = vmul.f32 %v634, %v635
  %v637 = vsub.f32 1.0, %v636
  %v638 = vmul.f32 %v635, %v637
  %v639 = vadd.f32 %v635, %v638
  %vm640 = vweird.f32 %v634
  %vm641 = vweird.f32 %v635
  %vm642 = vmor %vm640, %vm641
  %v643 = vsel %vm642, %v635, %v639
  %v644 = vand.u32 2147483647, %v634
  %vm645 = vcmp.eq.f32.partialorder %v644, 8.507059e+37
  %v646 = vand.u32 %v634, 2147483648
  %v647 = vor.u32 1.1754944e-38, %v646
  %v648 = vsel %vm645, %v647, %v643
  %v649 = vmul.f32 1.0, %v648
  %v650 = vadd.f32 %v588, %v614
  %v651 = vxor.u32 %v650, 2147483648
  %v652 = vmul.f32 %v651, 1.442695
  %v653 = vpow.pop %v652
  %v654 = vadd.f32 %v653, 1.0
  %v655 = vrcp.pop %v654
  %v656 = vmul.f32 %v654, %v655
  %v657 = vsub.f32 1.0, %v656
  %v658 = vmul.f32 %v655, %v657
  %v659 = vadd.f32 %v655, %v658
  %vm660 = vweird.f32 %v654
  %vm661 = vweird.f32 %v655
  %vm662 = vmor %vm660, %vm661
  %v663 = vsel %vm662, %v655, %v659
  %v664 = vand.u32 2147483647, %v654
  %vm665 = vcmp.eq.f32.partialorder %v664, 8.507059e+37
  %v666 = vand.u32 %v654, 2147483648
  %v667 = vor.u32 1.1754944e-38, %v666
  %v668 = vsel %vm665, %v667, %v663
  %v669 = vmul.f32 1.0, %v668
  %v670 = vadd.f32 %v627, %v273
  %v671 = vmul.f32 %v649, %v670
  %v672 = vadd.f32 %v589, %v671
  %v673 = vtanh.pop %v672
  %v674 = vsub.f32 1.0, %v669
  %v675 = vmul.f32 %v674, %v673
  %v676 = vmul.f32 %v669, %v583
  %v677 = vadd.f32 %v675, %v676
  %678 = vst [vmem:[#allocation2] sm:$0xff] %v677
  %v679 = vpack.c.bf16 %v677, %v677
  %s680 = scalar_lea.vmem %s4, 16
  %681 = vst [vmem:[%s680] sm:$0xf] %v679
  %v682 = vld [vmem:[#allocation2] sm:$0xff]
  %s683 = scalar_lea.vmem %s0, 60
  %v684 = vld [vmem:[%s683] sm:$0xff]
  %v685 = vld [vmem:[%s683 + $0x8] sm:$0xf]
  %v686 = vunpack.c.l.bf16 %v684
  %v687 = vunpack.c.h.bf16 %v684
  %v688 = vunpack.c.l.bf16 %v685
  %v689 = vpack.c.bf16 %v682, %v682
  %690 = vmatpush.bf16.msra.mxu0 %v166
  %691 = vmatpush.bf16.msra.mxu0 %v163
  %692 = vmatpush.bf16.msra.mxu0 %v160
  %693 = vmatpush.bf16.msra.mxu0 %v157
  %694 = vmatpush.bf16.msra.mxu0 %v154
  %695 = vmatpush.bf16.msra.mxu0 %v151
  %696 = vmatpush.bf16.msra.mxu0 %v148
  %697 = vmatpush.bf16.msra.mxu0 %v145
  %698 = vmatmul.bf16.gmra.mxu0 %v689
  %v699 = vpop.f32.mrf.mxu0
  %v700 = vadd.f32 0.0, %v699
  %v701 = vpop.f32.mrf.mxu0
  %702 = vdwg.mxu0
  %703 = vmatpush.bf16.msra.mxu0 %v167
  %704 = vmatpush.bf16.msra.mxu0 %v164
  %705 = vmatpush.bf16.msra.mxu0 %v161
  %706 = vmatpush.bf16.msra.mxu0 %v158
  %707 = vmatpush.bf16.msra.mxu0 %v155
  %708 = vmatpush.bf16.msra.mxu0 %v152
  %709 = vmatpush.bf16.msra.mxu0 %v149
  %710 = vmatpush.bf16.msra.mxu0 %v146
  %711 = vmatmul.bf16.gmra.mxu0 %v689
  %v712 = vpop.f32.mrf.mxu0
  %v713 = vadd.f32 0.0, %v712
  %v714 = vpop.f32.mrf.mxu0
  %715 = vdwg.mxu0
  %716 = vmatpush.bf16.msra.mxu0 %v168
  %717 = vmatpush.bf16.msra.mxu0 %v165
  %718 = vmatpush.bf16.msra.mxu0 %v162
  %719 = vmatpush.bf16.msra.mxu0 %v159
  %720 = vmatpush.bf16.msra.mxu0 %v156
  %721 = vmatpush.bf16.msra.mxu0 %v153
  %722 = vmatpush.bf16.msra.mxu0 %v150
  %723 = vmatpush.bf16.msra.mxu0 %v147
  %724 = vmatmul.bf16.gmra.mxu0 %v689
  %v725 = vpop.f32.mrf.mxu0
  %v726 = vadd.f32 0.0, %v725
  %v727 = vpop.f32.mrf.mxu0
  %728 = vdwg.mxu0
  %v729 = vadd.f32 %v686, %v700
  %v730 = vxor.u32 %v729, 2147483648
  %v731 = vmul.f32 %v730, 1.442695
  %v732 = vpow.pop %v731
  %v733 = vadd.f32 %v732, 1.0
  %v734 = vrcp.pop %v733
  %v735 = vmul.f32 %v733, %v734
  %v736 = vsub.f32 1.0, %v735
  %v737 = vmul.f32 %v734, %v736
  %v738 = vadd.f32 %v734, %v737
  %vm739 = vweird.f32 %v733
  %vm740 = vweird.f32 %v734
  %vm741 = vmor %vm739, %vm740
  %v742 = vsel %vm741, %v734, %v738
  %v743 = vand.u32 2147483647, %v733
  %vm744 = vcmp.eq.f32.partialorder %v743, 8.507059e+37
  %v745 = vand.u32 %v733, 2147483648
  %v746 = vor.u32 1.1754944e-38, %v745
  %v747 = vsel %vm744, %v746, %v742
  %v748 = vmul.f32 1.0, %v747
  %v749 = vadd.f32 %v687, %v713
  %v750 = vxor.u32 %v749, 2147483648
  %v751 = vmul.f32 %v750, 1.442695
  %v752 = vpow.pop %v751
  %v753 = vadd.f32 %v752, 1.0
  %v754 = vrcp.pop %v753
  %v755 = vmul.f32 %v753, %v754
  %v756 = vsub.f32 1.0, %v755
  %v757 = vmul.f32 %v754, %v756
  %v758 = vadd.f32 %v754, %v757
  %vm759 = vweird.f32 %v753
  %vm760 = vweird.f32 %v754
  %vm761 = vmor %vm759, %vm760
  %v762 = vsel %vm761, %v754, %v758
  %v763 = vand.u32 2147483647, %v753
  %vm764 = vcmp.eq.f32.partialorder %v763, 8.507059e+37
  %v765 = vand.u32 %v753, 2147483648
  %v766 = vor.u32 1.1754944e-38, %v765
  %v767 = vsel %vm764, %v766, %v762
  %v768 = vmul.f32 1.0, %v767
  %v769 = vadd.f32 %v726, %v273
  %v770 = vmul.f32 %v748, %v769
  %v771 = vadd.f32 %v688, %v770
  %v772 = vtanh.pop %v771
  %v773 = vsub.f32 1.0, %v768
  %v774 = vmul.f32 %v773, %v772
  %v775 = vmul.f32 %v768, %v682
  %v776 = vadd.f32 %v774, %v775
  %777 = vst [vmem:[#allocation2] sm:$0xff] %v776
  %v778 = vpack.c.bf16 %v776, %v776
  %s779 = scalar_lea.vmem %s4, 20
  %780 = vst [vmem:[%s779] sm:$0xf] %v778
  %v781 = vld [vmem:[#allocation2] sm:$0xff]
  %s782 = scalar_lea.vmem %s0, 72
  %v783 = vld [vmem:[%s782] sm:$0xff]
  %v784 = vld [vmem:[%s782 + $0x8] sm:$0xf]
  %v785 = vunpack.c.l.bf16 %v783
  %v786 = vunpack.c.h.bf16 %v783
  %v787 = vunpack.c.l.bf16 %v784
  %v788 = vpack.c.bf16 %v781, %v781
  %789 = vmatpush.bf16.msra.mxu0 %v166
  %790 = vmatpush.bf16.msra.mxu0 %v163
  %791 = vmatpush.bf16.msra.mxu0 %v160
  %792 = vmatpush.bf16.msra.mxu0 %v157
  %793 = vmatpush.bf16.msra.mxu0 %v154
  %794 = vmatpush.bf16.msra.mxu0 %v151
  %795 = vmatpush.bf16.msra.mxu0 %v148
  %796 = vmatpush.bf16.msra.mxu0 %v145
  %797 = vmatmul.bf16.gmra.mxu0 %v788
  %v798 = vpop.f32.mrf.mxu0
  %v799 = vadd.f32 0.0, %v798
  %v800 = vpop.f32.mrf.mxu0
  %801 = vdwg.mxu0
  %802 = vmatpush.bf16.msra.mxu0 %v167
  %803 = vmatpush.bf16.msra.mxu0 %v164
  %804 = vmatpush.bf16.msra.mxu0 %v161
  %805 = vmatpush.bf16.msra.mxu0 %v158
  %806 = vmatpush.bf16.msra.mxu0 %v155
  %807 = vmatpush.bf16.msra.mxu0 %v152
  %808 = vmatpush.bf16.msra.mxu0 %v149
  %809 = vmatpush.bf16.msra.mxu0 %v146
  %810 = vmatmul.bf16.gmra.mxu0 %v788
  %v811 = vpop.f32.mrf.mxu0
  %v812 = vadd.f32 0.0, %v811
  %v813 = vpop.f32.mrf.mxu0
  %814 = vdwg.mxu0
  %815 = vmatpush.bf16.msra.mxu0 %v168
  %816 = vmatpush.bf16.msra.mxu0 %v165
  %817 = vmatpush.bf16.msra.mxu0 %v162
  %818 = vmatpush.bf16.msra.mxu0 %v159
  %819 = vmatpush.bf16.msra.mxu0 %v156
  %820 = vmatpush.bf16.msra.mxu0 %v153
  %821 = vmatpush.bf16.msra.mxu0 %v150
  %822 = vmatpush.bf16.msra.mxu0 %v147
  %823 = vmatmul.bf16.gmra.mxu0 %v788
  %v824 = vpop.f32.mrf.mxu0
  %v825 = vadd.f32 0.0, %v824
  %v826 = vpop.f32.mrf.mxu0
  %827 = vdwg.mxu0
  %v828 = vadd.f32 %v785, %v799
  %v829 = vxor.u32 %v828, 2147483648
  %v830 = vmul.f32 %v829, 1.442695
  %v831 = vpow.pop %v830
  %v832 = vadd.f32 %v831, 1.0
  %v833 = vrcp.pop %v832
  %v834 = vmul.f32 %v832, %v833
  %v835 = vsub.f32 1.0, %v834
  %v836 = vmul.f32 %v833, %v835
  %v837 = vadd.f32 %v833, %v836
  %vm838 = vweird.f32 %v832
  %vm839 = vweird.f32 %v833
  %vm840 = vmor %vm838, %vm839
  %v841 = vsel %vm840, %v833, %v837
  %v842 = vand.u32 2147483647, %v832
  %vm843 = vcmp.eq.f32.partialorder %v842, 8.507059e+37
  %v844 = vand.u32 %v832, 2147483648
  %v845 = vor.u32 1.1754944e-38, %v844
  %v846 = vsel %vm843, %v845, %v841
  %v847 = vmul.f32 1.0, %v846
  %v848 = vadd.f32 %v786, %v812
  %v849 = vxor.u32 %v848, 2147483648
  %v850 = vmul.f32 %v849, 1.442695
  %v851 = vpow.pop %v850
  %v852 = vadd.f32 %v851, 1.0
  %v853 = vrcp.pop %v852
  %v854 = vmul.f32 %v852, %v853
  %v855 = vsub.f32 1.0, %v854
  %v856 = vmul.f32 %v853, %v855
  %v857 = vadd.f32 %v853, %v856
  %vm858 = vweird.f32 %v852
  %vm859 = vweird.f32 %v853
  %vm860 = vmor %vm858, %vm859
  %v861 = vsel %vm860, %v853, %v857
  %v862 = vand.u32 2147483647, %v852
  %vm863 = vcmp.eq.f32.partialorder %v862, 8.507059e+37
  %v864 = vand.u32 %v852, 2147483648
  %v865 = vor.u32 1.1754944e-38, %v864
  %v866 = vsel %vm863, %v865, %v861
  %v867 = vmul.f32 1.0, %v866
  %v868 = vadd.f32 %v825, %v273
  %v869 = vmul.f32 %v847, %v868
  %v870 = vadd.f32 %v787, %v869
  %v871 = vtanh.pop %v870
  %v872 = vsub.f32 1.0, %v867
  %v873 = vmul.f32 %v872, %v871
  %v874 = vmul.f32 %v867, %v781
  %v875 = vadd.f32 %v873, %v874
  %876 = vst [vmem:[#allocation2] sm:$0xff] %v875
  %v877 = vpack.c.bf16 %v875, %v875
  %s878 = scalar_lea.vmem %s4, 24
  %879 = vst [vmem:[%s878] sm:$0xf] %v877
  %v880 = vld [vmem:[#allocation2] sm:$0xff]
  %s881 = scalar_lea.vmem %s0, 84
  %v882 = vld [vmem:[%s881] sm:$0xff]
  %v883 = vld [vmem:[%s881 + $0x8] sm:$0xf]
  %v884 = vunpack.c.l.bf16 %v882
  %v885 = vunpack.c.h.bf16 %v882
  %v886 = vunpack.c.l.bf16 %v883
  %v887 = vpack.c.bf16 %v880, %v880
  %888 = vmatpush.bf16.msra.mxu0 %v166
  %889 = vmatpush.bf16.msra.mxu0 %v163
  %890 = vmatpush.bf16.msra.mxu0 %v160
  %891 = vmatpush.bf16.msra.mxu0 %v157
  %892 = vmatpush.bf16.msra.mxu0 %v154
  %893 = vmatpush.bf16.msra.mxu0 %v151
  %894 = vmatpush.bf16.msra.mxu0 %v148
  %895 = vmatpush.bf16.msra.mxu0 %v145
  %896 = vmatmul.bf16.gmra.mxu0 %v887
  %v897 = vpop.f32.mrf.mxu0
  %v898 = vadd.f32 0.0, %v897
  %v899 = vpop.f32.mrf.mxu0
  %900 = vdwg.mxu0
  %901 = vmatpush.bf16.msra.mxu0 %v167
  %902 = vmatpush.bf16.msra.mxu0 %v164
  %903 = vmatpush.bf16.msra.mxu0 %v161
  %904 = vmatpush.bf16.msra.mxu0 %v158
  %905 = vmatpush.bf16.msra.mxu0 %v155
  %906 = vmatpush.bf16.msra.mxu0 %v152
  %907 = vmatpush.bf16.msra.mxu0 %v149
  %908 = vmatpush.bf16.msra.mxu0 %v146
  %909 = vmatmul.bf16.gmra.mxu0 %v887
  %v910 = vpop.f32.mrf.mxu0
  %v911 = vadd.f32 0.0, %v910
  %v912 = vpop.f32.mrf.mxu0
  %913 = vdwg.mxu0
  %914 = vmatpush.bf16.msra.mxu0 %v168
  %915 = vmatpush.bf16.msra.mxu0 %v165
  %916 = vmatpush.bf16.msra.mxu0 %v162
  %917 = vmatpush.bf16.msra.mxu0 %v159
  %918 = vmatpush.bf16.msra.mxu0 %v156
  %919 = vmatpush.bf16.msra.mxu0 %v153
  %920 = vmatpush.bf16.msra.mxu0 %v150
  %921 = vmatpush.bf16.msra.mxu0 %v147
  %922 = vmatmul.bf16.gmra.mxu0 %v887
  %v923 = vpop.f32.mrf.mxu0
  %v924 = vadd.f32 0.0, %v923
  %v925 = vpop.f32.mrf.mxu0
  %926 = vdwg.mxu0
  %v927 = vadd.f32 %v884, %v898
  %v928 = vxor.u32 %v927, 2147483648
  %v929 = vmul.f32 %v928, 1.442695
  %v930 = vpow.pop %v929
  %v931 = vadd.f32 %v930, 1.0
  %v932 = vrcp.pop %v931
  %v933 = vmul.f32 %v931, %v932
  %v934 = vsub.f32 1.0, %v933
  %v935 = vmul.f32 %v932, %v934
  %v936 = vadd.f32 %v932, %v935
  %vm937 = vweird.f32 %v931
  %vm938 = vweird.f32 %v932
  %vm939 = vmor %vm937, %vm938
  %v940 = vsel %vm939, %v932, %v936
  %v941 = vand.u32 2147483647, %v931
  %vm942 = vcmp.eq.f32.partialorder %v941, 8.507059e+37
  %v943 = vand.u32 %v931, 2147483648
  %v944 = vor.u32 1.1754944e-38, %v943
  %v945 = vsel %vm942, %v944, %v940
  %v946 = vmul.f32 1.0, %v945
  %v947 = vadd.f32 %v885, %v911
  %v948 = vxor.u32 %v947, 2147483648
  %v949 = vmul.f32 %v948, 1.442695
  %v950 = vpow.pop %v949
  %v951 = vadd.f32 %v950, 1.0
  %v952 = vrcp.pop %v951
  %v953 = vmul.f32 %v951, %v952
  %v954 = vsub.f32 1.0, %v953
  %v955 = vmul.f32 %v952, %v954
  %v956 = vadd.f32 %v952, %v955
  %vm957 = vweird.f32 %v951
  %vm958 = vweird.f32 %v952
  %vm959 = vmor %vm957, %vm958
  %v960 = vsel %vm959, %v952, %v956
  %v961 = vand.u32 2147483647, %v951
  %vm962 = vcmp.eq.f32.partialorder %v961, 8.507059e+37
  %v963 = vand.u32 %v951, 2147483648
  %v964 = vor.u32 1.1754944e-38, %v963
  %v965 = vsel %vm962, %v964, %v960
  %v966 = vmul.f32 1.0, %v965
  %v967 = vadd.f32 %v924, %v273
  %v968 = vmul.f32 %v946, %v967
  %v969 = vadd.f32 %v886, %v968
  %v970 = vtanh.pop %v969
  %v971 = vsub.f32 1.0, %v966
  %v972 = vmul.f32 %v971, %v970
  %v973 = vmul.f32 %v966, %v880
  %v974 = vadd.f32 %v972, %v973
  %975 = vst [vmem:[#allocation2] sm:$0xff] %v974
  %v976 = vpack.c.bf16 %v974, %v974
  %s977 = scalar_lea.vmem %s4, 28
  %978 = vst [vmem:[%s977] sm:$0xf] %v976
  // Predicated region
  $region22: #{gru_decoder_forward.2} parent=0 // pred_check
    %p979 = pneg %p19
  $region23: #{gru_decoder_forward.2} parent=0 // pred_check_branch
    %981 = sbr.rel (%p979) target = $region25
  $region24: #{gru_decoder_forward.2} parent=0 // pred_region
    %v982 = vld [vmem:[#allocation2] sm:$0xff]
    %983 = vst [vmem:[%s5] sm:$0xff] %v982
  $region25: #{gru_decoder_forward.2} parent=0 // pred_fallthru
    _
  // Predicated region
  $region26: #{gru_decoder_forward.2} parent=0 // pred_check
    _
  $region27: #{gru_decoder_forward.2} parent=0 // pred_check_branch
    %985 = sbr.rel (0) target = $region29
  $region28: #{gru_decoder_forward.2} parent=0 // pred_region
    _
  $region29: #{gru_decoder_forward.2} parent=0 // pred_fallthru
    _
  // Predicated region
  $region30: #{gru_decoder_forward.2} parent=0 // pred_check
    _
  $region31: #{gru_decoder_forward.2} parent=0 // pred_check_branch
    %987 = sbr.rel (0) target = $region33
  $region32: #{gru_decoder_forward.2} parent=0 // pred_region
    _
  $region33: #{gru_decoder_forward.2} parent=0 // pred_fallthru
    _
  // Predicated region
  $region34: #{gru_decoder_forward.2} parent=0 // pred_check
    _
  $region35: #{gru_decoder_forward.2} parent=0 // pred_check_branch
    %989 = sbr.rel (0) target = $region37
  $region36: #{gru_decoder_forward.2} parent=0 // pred_region
    _
  $region37: #{gru_decoder_forward.2} parent=0 // pred_fallthru
    _
  // Predicated region
  $region38: #{gru_decoder_forward.2} parent=0 // pred_check
    _
  $region39: #{gru_decoder_forward.2} parent=0 // pred_check_branch
    %991 = sbr.rel (0) target = $region41
  $region40: #{gru_decoder_forward.2} parent=0 // pred_region
    _
  $region41: #{gru_decoder_forward.2} parent=0 // pred_fallthru
    _

</llo_original>
